<compile_context>
chip_gen: v7x
topology: tpu7x:2x2x1
jax: 0.10.0
libtpu: 0.0.40
codegen_flags: <defaults>
</compile_context>

<pallas_src>
import functools

import numpy as np

import jax
import jax.numpy as jnp
from jax.experimental import pallas as pl
from jax.experimental.pallas import tpu as pltpu


# --------------------------------- fused kernel --------------------------------- #

def _conv_up_kernel(x_ref, r_ref, a_ref, g1_ref, b1_ref, g2_ref, b2_ref, o_ref, *, nb):
    """Upsample(x2) -> conv3x3+ReLU -> conv3x3+ReLU on lane-dense row-matrices.

    Rows = H, lanes = fused (W, C) axis.  All zero padding lives in the host-built
    matrices, so there is no jnp.pad and no shifted-slice relayout anywhere.
    """
    f32 = jnp.float32
    mx = g1_ref.dtype        # bf16 on the perf path, f32 otherwise; accumulation is f32

    for b in range(nb):      # static; nb == 1 (batch in grid, v7x) or N (collapsed grid)
        # -- Stage 1: W-upsample + conv1 W zero-pad + channel interleave, ONE matmul --
        # r folds the bilinear W-interp, the W-pad and the channel routing into a
        # single (cin*w, wp*cin) operand -> contraction depth cin*w instead of w.
        p = jnp.dot(x_ref[b], r_ref[...], preferred_element_type=f32)     # (h, wp*cin)

        # -- Stage 2: conv1 -- W-taps + channel mix first (banded g1, conv2's W-pad
        # columns built in), then H-upsample fused with conv1's three H-taps as one
        # deep matmul (taps stacked along sublanes -> contraction depth 3*h).
        pc = p.astype(mx)
        q = jnp.concatenate(
            [jnp.dot(pc, g1_ref[i], preferred_element_type=f32) for i in range(3)],
            axis=0)                                                       # (3h, wp*cmid)
        y1 = jnp.maximum(jnp.dot(a_ref[...], q, preferred_element_type=f32)
                         + b1_ref[...], 0.0)                              # (ho, wp*cmid)
        # NOTE: wp*cmid (= 68 here) wastes ~47% of each vreg's 128 lanes; if cmid grows,
        # choose a column layout whose width is a multiple of 128.

        # -- Stage 3: conv2 -- H zero-pad + row shifts via XLU sublane rolls with the
        # wrapped edge row zeroed; W-taps + channel mix banded into g2 whose output
        # columns are already channel-major and lane dense.
        ho = y1.shape[0]
        rows = jax.lax.broadcasted_iota(jnp.int32, y1.shape, 0)
        t0 = jnp.where(rows == 0, 0.0, pltpu.roll(y1, shift=1, axis=0))          # y1[r-1]
        t2 = jnp.where(rows == ho - 1, 0.0, pltpu.roll(y1, shift=ho - 1, axis=0))  # y1[r+1]
        acc2 = (jnp.dot(t0.astype(mx), g2_ref[0], preferred_element_type=f32)
                + jnp.dot(y1.astype(mx), g2_ref[1], preferred_element_type=f32)
                + jnp.dot(t2.astype(mx), g2_ref[2], preferred_element_type=f32))
        y2 = jnp.maximum(acc2 + b2_ref[...], 0.0)                         # (ho, cout*wo)

        # -- Stage 4: single lane-dense, unmasked store --------------------------------
        o_ref[b] = y2.astype(o_ref.dtype)


# ----------------------------- host-side matrix builders ------------------------ #

def _interp_matrix_np(out_size, in_size):
    """PyTorch bilinear align_corners=True 1-D interpolation matrix (out, in)."""
    m = np.zeros((out_size, in_size), np.float32)
    if in_size == 1:
        m[:, 0] = 1.0
        return m
    src = np.arange(out_size, dtype=np.float64) * (in_size - 1) / (out_size - 1)
    i0 = np.minimum(np.floor(src).astype(np.int64), in_size - 2)
    frac = (src - i0).astype(np.float32)
    rows = np.arange(out_size)
    m[rows, i0] += 1.0 - frac
    m[rows, i0 + 1] += frac
    return m


def _band_weights_np(w_hwio, wo, n_in_groups, n_out_cols, col_index):
    """Banded conv-tap matrices: G[i, (q+j)*Ci + c, col_index(q, o)] = w[i, j, c, o]."""
    kh, kw, ci, co = w_hwio.shape
    g = np.zeros((kh, n_in_groups * ci, n_out_cols), np.float32)
    ocs = np.arange(co)
    for j in range(kw):
        for q in range(wo):
            rows = (q + j) * ci + np.arange(ci)
            cols = col_index(q, ocs)
            g[:, rows[:, None], cols[None, :]] += w_hwio[:, j, :, :]
    return g


def build_conv_up_constants(params, h, w, *, use_bf16=True):
    """One-time host-side builder of the fused-kernel operands (pure numpy; nothing is
    rebuilt inside the jitted forward).  Weights are HWIO, biases (C,)."""
    # TODO(synk): assumes kernel_size=3, padding=1, stride=1 (the module defaults).
    w1 = np.asarray(params[0], np.float32)
    b1 = np.asarray(params[1], np.float32)
    w2 = np.asarray(params[2], np.float32)
    b2 = np.asarray(params[3], np.float32)
    kh, kw, cin, cmid = w1.shape
    cout = w2.shape[-1]
    assert (kh, kw) == (3, 3) and w2.shape[:3] == (3, 3, cmid)
    ho, wo = 2 * h, 2 * w
    hp, wp = ho + 2, wo + 2

    # Stage-1 routing: W bilinear interp + conv1 W zero-pad + channel interleave,
    # folded into one (cin*w, wp*cin) matrix so Stage 1 is a single deep matmul.
    bc = _interp_matrix_np(wo, w)                      # (wo, w)
    bt_pad = np.zeros((w, wp), np.float32)
    bt_pad[:, 1:1 + wo] = bc.T
    r = np.zeros((cin * w, wp * cin), np.float32)
    for c in range(cin):
        r[c * w:(c + 1) * w, c::cin] = bt_pad          # channel c -> lane slots c::cin

    # Stage-2 H matrix: zero-padded H interp; the three conv1 H-tap windows are stacked
    # along columns so the H-upsample + tap-sum is one (ho, 3h) x (3h, wp*cmid) matmul.
    ar = _interp_matrix_np(ho, h)                      # (ho, h)
    a_pad = np.zeros((hp, h), np.float32)
    a_pad[1:1 + ho] = ar
    a_cat = np.concatenate([a_pad[i:i + ho] for i in range(3)], axis=1)   # (ho, 3h)

    # Banded conv-tap matrices ("im2col folded into the weights").
    g1 = _band_weights_np(w1, wo, wp, wp * cmid, lambda q, o: (q + 1) * cmid + o)
    g2 = _band_weights_np(w2, wo, wp, cout * wo, lambda q, o: o * wo + q)

    b1row = np.zeros((1, wp * cmid), np.float32)       # conv2's W-pad columns stay 0
    b1row[0, cmid:cmid + wo * cmid] = np.tile(b1, wo)
    b2row = np.repeat(b2, wo)[None, :].astype(np.float32)

    mx = jnp.bfloat16 if use_bf16 else jnp.float32     # MXU-operand dtype for g1/g2
    return dict(
        r=jnp.asarray(r), a=jnp.asarray(a_cat),
        g1=jnp.asarray(g1, dtype=mx), b1row=jnp.asarray(b1row),
        g2=jnp.asarray(g2, dtype=mx), b2row=jnp.asarray(b2row),
    )


# ----------------------------- public wrapper ----------------------------------- #

def _tensorcores_per_chip():
    try:
        kind = jax.devices()[0].device_kind.lower()
    except Exception:
        return 1
    # v7x exposes 2 TensorCores per chip (megacore); v5e/v6e are single-TC.
    return 2 if "v7" in kind else 1


def _const_spec(arr):
    nd = int(arr.ndim)

    def imap(i):
        return (0,) * nd

    return pl.BlockSpec(tuple(arr.shape), imap)


def conv_up_forward(x_nchw, consts, *, batch_per_step=None):
    """Pallas implementation of ConvUp.forward.  Input/output are NCHW (PyTorch
    layout); `consts` comes from build_conv_up_constants."""
    n, cin, h, w = x_nchw.shape
    ho, wo = 2 * h, 2 * w
    wp = wo + 2
    cmid = consts["b1row"].shape[1] // wp
    cout = consts["b2row"].shape[1] // wo

    nb = batch_per_step
    if nb is None:
        # v7x (2 TCs): keep the batch in the grid for megacore sharding.
        # v5e/v6e (1 TC): the grid is a serial loop -> collapse the batch into one
        # step (saves ~0.35 us/step overhead + duplicate constant-operand DMA issue).
        nb = 1 if _tensorcores_per_chip() >= 2 else n
    nb = max(1, min(nb, n))
    assert n % nb == 0

    # Layout plumbing only: NCHW -> (N, H, C*W) so Stage 1 is one deep matmul.
    x2 = jnp.transpose(x_nchw, (0, 2, 1, 3)).reshape(n, h, cin * w)

    kernel = functools.partial(_conv_up_kernel, nb=nb)
    out_slab = pl.pallas_call(
        kernel,
        out_shape=jax.ShapeDtypeStruct((n, ho, cout * wo), x_nchw.dtype),
        grid=(n // nb,),
        in_specs=[
            pl.BlockSpec((nb, h, cin * w), lambda i: (i, 0, 0)),
            _const_spec(consts["r"]),
            _const_spec(consts["a"]),
            _const_spec(consts["g1"]),
            _const_spec(consts["b1row"]),
            _const_spec(consts["g2"]),
            _const_spec(consts["b2row"]),
        ],
        out_specs=pl.BlockSpec((nb, ho, cout * wo), lambda i: (i, 0, 0)),
        compiler_params=pltpu.CompilerParams(
            dimension_semantics=("parallel",),        # shards batch across TCs on v7x
            vmem_limit_bytes=32 * 1024 * 1024,        # safe on v5e/v6e/v7x; use is ~1 MiB
        ),
    )(x2, consts["r"], consts["a"], consts["g1"], consts["b1row"],
      consts["g2"], consts["b2row"])

    # Cheap XLA untangle of the lane-dense slab back to NCHW (~256 KiB).
    return out_slab.reshape(n, ho, cout, wo).transpose(0, 2, 1, 3)


# ----------------------------- pure-JAX reference -------------------------------- #

def _reference(x_nchw, params):
    w1, b1, w2, b2 = params
    n, c, h, w = x_nchw.shape
    a = jnp.asarray(_interp_matrix_np(2 * h, h))
    b = jnp.asarray(_interp_matrix_np(2 * w, w))
    x = jnp.einsum('ih,nchw->nciw', a, x_nchw)
    x = jnp.einsum('jw,nciw->ncij', b, x)

    def conv(x, w_hwio, bias):
        w_oihw = jnp.transpose(w_hwio, (3, 2, 0, 1))
        y = jax.lax.conv_general_dilated(
            x, w_oihw, (1, 1), ((1, 1), (1, 1)),
            dimension_numbers=('NCHW', 'OIHW', 'NCHW'))
        return jnp.maximum(y + bias[None, :, None, None], 0.0)

    return conv(conv(x, w1, b1), w2, b2)


# ----------------------------- main ----------------------------------------------- #

if __name__ == "__main__":
    key = jax.random.PRNGKey(0)
    N, Cin, H, W = 2, 4, 16, 16
    Cout = 8
    Cmid = Cin // 2                    # DoubleConv(mid_channels=in_channels//2)
    K = 3

    k_x, k_w1, k_b1, k_w2, k_b2 = jax.random.split(key, 5)
    x = jax.random.normal(k_x, (N, Cin, H, W), jnp.float32)

    # Deterministic parameter init (HWIO layout).
    w1 = jax.random.normal(k_w1, (K, K, Cin, Cmid), jnp.float32) * 0.1
    b1 = jax.random.normal(k_b1, (Cmid,), jnp.float32) * 0.1
    w2 = jax.random.normal(k_w2, (K, K, Cmid, Cout), jnp.float32) * 0.1
    b2 = jax.random.normal(k_b2, (Cout,), jnp.float32) * 0.1
    params = (w1, b1, w2, b2)

    ref = jax.block_until_ready(_reference(x, params))
    fwd = jax.jit(conv_up_forward)

    # Exact-semantics check: f32 MXU operands, tight tolerance.
    consts_f32 = build_conv_up_constants(params, H, W, use_bf16=False)
    out_f32 = jax.block_until_ready(fwd(x, consts_f32))
    assert out_f32.shape == (N, Cout, 2 * H, 2 * W), out_f32.shape
    err32 = float(jnp.max(jnp.abs(out_f32 - ref)))
    assert jnp.allclose(out_f32, ref, atol=1e-4, rtol=1e-4), err32

    # Perf path: bf16 MXU operands for g1/g2 matmuls, f32 interp/accum/epilogue.
    consts_bf16 = build_conv_up_constants(params, H, W, use_bf16=True)
    out_bf16 = jax.block_until_ready(fwd(x, consts_bf16))
    err16 = float(jnp.max(jnp.abs(out_bf16 - ref)))
    assert jnp.allclose(out_bf16, ref, atol=5e-2, rtol=5e-2), err16

    print("KERNEL_OK")
</pallas_src>

<mosaic_0001>
module attributes {stable_mosaic.version = 11 : i64} {
  func.func @_conv_up_kernel(%arg0: i32, %arg1: memref<2x16x64xf32, #tpu.memory_space<vmem>>, %arg2: memref<64x136xf32, #tpu.memory_space<vmem>>, %arg3: memref<32x48xf32, #tpu.memory_space<vmem>>, %arg4: memref<3x136x68xf32, #tpu.memory_space<vmem>>, %arg5: memref<1x68xf32, #tpu.memory_space<vmem>>, %arg6: memref<3x68x256xf32, #tpu.memory_space<vmem>>, %arg7: memref<1x256xf32, #tpu.memory_space<vmem>>, %arg8: memref<2x32x256xf32, #tpu.memory_space<vmem>>) attributes {dimension_semantics = [#tpu.dimension_semantics<parallel>], iteration_bounds = array<i64: 1>, scalar_prefetch = 0 : i64, scratch_operands = 0 : i64, tpu.core_type = #tpu.core_type<tc>, window_params = [{transform_indices = @transform_0, window_bounds = array<i64: 2, 16, 64>}, {pipeline_mode = #tpu.pipeline_mode<synchronous>, transform_indices = @transform_1, window_bounds = array<i64: 64, 136>}, {pipeline_mode = #tpu.pipeline_mode<synchronous>, transform_indices = @transform_2, window_bounds = array<i64: 32, 48>}, {pipeline_mode = #tpu.pipeline_mode<synchronous>, transform_indices = @transform_3, window_bounds = array<i64: 3, 136, 68>}, {pipeline_mode = #tpu.pipeline_mode<synchronous>, transform_indices = @transform_4, window_bounds = array<i64: 1, 68>}, {pipeline_mode = #tpu.pipeline_mode<synchronous>, transform_indices = @transform_5, window_bounds = array<i64: 3, 68, 256>}, {pipeline_mode = #tpu.pipeline_mode<synchronous>, transform_indices = @transform_6, window_bounds = array<i64: 1, 256>}, {transform_indices = @transform_7, window_bounds = array<i64: 2, 32, 256>}]} {
    %c0 = arith.constant 0 : index
    %c0_0 = arith.constant 0 : index
    %c0_1 = arith.constant 0 : index
    %0 = vector.load %arg1[%c0, %c0_0, %c0_1] : memref<2x16x64xf32, #tpu.memory_space<vmem>>, vector<1x16x64xf32>
    %1 = vector.shape_cast %0 : vector<1x16x64xf32> to vector<16x64xf32>
    %c0_2 = arith.constant 0 : index
    %c0_3 = arith.constant 0 : index
    %2 = vector.load %arg2[%c0_2, %c0_3] : memref<64x136xf32, #tpu.memory_space<vmem>>, vector<64x136xf32>
    %cst = arith.constant dense<0.000000e+00> : vector<16x136xf32>
    %3 = tpu.matmul %1, %2, %cst {dimension_numbers = #tpu.dot_dimension_numbers<[1], [0], [0], [1], [0, 0, 1, 1], [], []>} : vector<16x64xf32>, vector<64x136xf32>, vector<16x136xf32> -> vector<16x136xf32>
    %c0_4 = arith.constant 0 : index
    %c0_5 = arith.constant 0 : index
    %c0_6 = arith.constant 0 : index
    %4 = vector.load %arg4[%c0_4, %c0_5, %c0_6] : memref<3x136x68xf32, #tpu.memory_space<vmem>>, vector<1x136x68xf32>
    %5 = vector.shape_cast %4 : vector<1x136x68xf32> to vector<136x68xf32>
    %cst_7 = arith.constant dense<0.000000e+00> : vector<16x68xf32>
    %6 = tpu.matmul %3, %5, %cst_7 {dimension_numbers = #tpu.dot_dimension_numbers<[1], [0], [0], [1], [0, 0, 1, 1], [], []>} : vector<16x136xf32>, vector<136x68xf32>, vector<16x68xf32> -> vector<16x68xf32>
    %c1 = arith.constant 1 : index
    %c0_8 = arith.constant 0 : index
    %c0_9 = arith.constant 0 : index
    %7 = vector.load %arg4[%c1, %c0_8, %c0_9] : memref<3x136x68xf32, #tpu.memory_space<vmem>>, vector<1x136x68xf32>
    %8 = vector.shape_cast %7 : vector<1x136x68xf32> to vector<136x68xf32>
    %cst_10 = arith.constant dense<0.000000e+00> : vector<16x68xf32>
    %9 = tpu.matmul %3, %8, %cst_10 {dimension_numbers = #tpu.dot_dimension_numbers<[1], [0], [0], [1], [0, 0, 1, 1], [], []>} : vector<16x136xf32>, vector<136x68xf32>, vector<16x68xf32> -> vector<16x68xf32>
    %c2 = arith.constant 2 : index
    %c0_11 = arith.constant 0 : index
    %c0_12 = arith.constant 0 : index
    %10 = vector.load %arg4[%c2, %c0_11, %c0_12] : memref<3x136x68xf32, #tpu.memory_space<vmem>>, vector<1x136x68xf32>
    %11 = vector.shape_cast %10 : vector<1x136x68xf32> to vector<136x68xf32>
    %cst_13 = arith.constant dense<0.000000e+00> : vector<16x68xf32>
    %12 = tpu.matmul %3, %11, %cst_13 {dimension_numbers = #tpu.dot_dimension_numbers<[1], [0], [0], [1], [0, 0, 1, 1], [], []>} : vector<16x136xf32>, vector<136x68xf32>, vector<16x68xf32> -> vector<16x68xf32>
    %13 = tpu.concatenate %6, %9, %12 in 0 : vector<16x68xf32>, vector<16x68xf32>, vector<16x68xf32> -> vector<48x68xf32>
    %c0_14 = arith.constant 0 : index
    %c0_15 = arith.constant 0 : index
    %14 = vector.load %arg3[%c0_14, %c0_15] : memref<32x48xf32, #tpu.memory_space<vmem>>, vector<32x48xf32>
    %cst_16 = arith.constant dense<0.000000e+00> : vector<32x68xf32>
    %15 = tpu.matmul %14, %13, %cst_16 {dimension_numbers = #tpu.dot_dimension_numbers<[1], [0], [0], [1], [0, 0, 1, 1], [], []>} : vector<32x48xf32>, vector<48x68xf32>, vector<32x68xf32> -> vector<32x68xf32>
    %c0_17 = arith.constant 0 : index
    %c0_18 = arith.constant 0 : index
    %16 = vector.load %arg5[%c0_17, %c0_18] : memref<1x68xf32, #tpu.memory_space<vmem>>, vector<1x68xf32>
    %17 = vector.broadcast %16 : vector<1x68xf32> to vector<32x68xf32>
    %18 = arith.addf %15, %17 : vector<32x68xf32>
    %cst_19 = arith.constant 0.000000e+00 : f32
    %19 = vector.broadcast %cst_19 : f32 to vector<32x68xf32>
    %20 = arith.maximumf %18, %19 : vector<32x68xf32>
    %21 = tpu.iota {dimensions = array<i32: 0>} : vector<32x68xi32>
    %c0_i32 = arith.constant 0 : i32
    %22 = vector.broadcast %c0_i32 : i32 to vector<32x68xi32>
    %23 = arith.cmpi eq, %21, %22 : vector<32x68xi32>
    %c1_i32 = arith.constant 1 : i32
    %24 = tpu.dynamic_rotate %20 by %c1_i32 dim 0 : vector<32x68xf32>, i32 -> vector<32x68xf32>
    %cst_20 = arith.constant 0.000000e+00 : f32
    %25 = vector.broadcast %cst_20 : f32 to vector<32x68xf32>
    %26 = arith.select %23, %25, %24 : vector<32x68xi1>, vector<32x68xf32>
    %c31_i32 = arith.constant 31 : i32
    %27 = vector.broadcast %c31_i32 : i32 to vector<32x68xi32>
    %28 = arith.cmpi eq, %21, %27 : vector<32x68xi32>
    %c31_i32_21 = arith.constant 31 : i32
    %29 = tpu.dynamic_rotate %20 by %c31_i32_21 dim 0 : vector<32x68xf32>, i32 -> vector<32x68xf32>
    %cst_22 = arith.constant 0.000000e+00 : f32
    %30 = vector.broadcast %cst_22 : f32 to vector<32x68xf32>
    %31 = arith.select %28, %30, %29 : vector<32x68xi1>, vector<32x68xf32>
    %c0_23 = arith.constant 0 : index
    %c0_24 = arith.constant 0 : index
    %c0_25 = arith.constant 0 : index
    %32 = vector.load %arg6[%c0_23, %c0_24, %c0_25] : memref<3x68x256xf32, #tpu.memory_space<vmem>>, vector<1x68x256xf32>
    %33 = vector.shape_cast %32 : vector<1x68x256xf32> to vector<68x256xf32>
    %cst_26 = arith.constant dense<0.000000e+00> : vector<32x256xf32>
    %34 = tpu.matmul %26, %33, %cst_26 {dimension_numbers = #tpu.dot_dimension_numbers<[1], [0], [0], [1], [0, 0, 1, 1], [], []>} : vector<32x68xf32>, vector<68x256xf32>, vector<32x256xf32> -> vector<32x256xf32>
    %c1_27 = arith.constant 1 : index
    %c0_28 = arith.constant 0 : index
    %c0_29 = arith.constant 0 : index
    %35 = vector.load %arg6[%c1_27, %c0_28, %c0_29] : memref<3x68x256xf32, #tpu.memory_space<vmem>>, vector<1x68x256xf32>
    %36 = vector.shape_cast %35 : vector<1x68x256xf32> to vector<68x256xf32>
    %cst_30 = arith.constant dense<0.000000e+00> : vector<32x256xf32>
    %37 = tpu.matmul %20, %36, %cst_30 {dimension_numbers = #tpu.dot_dimension_numbers<[1], [0], [0], [1], [0, 0, 1, 1], [], []>} : vector<32x68xf32>, vector<68x256xf32>, vector<32x256xf32> -> vector<32x256xf32>
    %38 = arith.addf %34, %37 : vector<32x256xf32>
    %c2_31 = arith.constant 2 : index
    %c0_32 = arith.constant 0 : index
    %c0_33 = arith.constant 0 : index
    %39 = vector.load %arg6[%c2_31, %c0_32, %c0_33] : memref<3x68x256xf32, #tpu.memory_space<vmem>>, vector<1x68x256xf32>
    %40 = vector.shape_cast %39 : vector<1x68x256xf32> to vector<68x256xf32>
    %cst_34 = arith.constant dense<0.000000e+00> : vector<32x256xf32>
    %41 = tpu.matmul %31, %40, %cst_34 {dimension_numbers = #tpu.dot_dimension_numbers<[1], [0], [0], [1], [0, 0, 1, 1], [], []>} : vector<32x68xf32>, vector<68x256xf32>, vector<32x256xf32> -> vector<32x256xf32>
    %42 = arith.addf %38, %41 : vector<32x256xf32>
    %c0_35 = arith.constant 0 : index
    %c0_36 = arith.constant 0 : index
    %43 = vector.load %arg7[%c0_35, %c0_36] : memref<1x256xf32, #tpu.memory_space<vmem>>, vector<1x256xf32>
    %44 = vector.broadcast %43 : vector<1x256xf32> to vector<32x256xf32>
    %45 = arith.addf %42, %44 : vector<32x256xf32>
    %cst_37 = arith.constant 0.000000e+00 : f32
    %46 = vector.broadcast %cst_37 : f32 to vector<32x256xf32>
    %47 = arith.maximumf %45, %46 : vector<32x256xf32>
    %c0_38 = arith.constant 0 : index
    %c0_39 = arith.constant 0 : index
    %c0_40 = arith.constant 0 : index
    %48 = vector.load %arg8[%c0_38, %c0_39, %c0_40] : memref<2x32x256xf32, #tpu.memory_space<vmem>>, vector<1x32x256xf32>
    %49 = vector.shape_cast %48 : vector<1x32x256xf32> to vector<32x256xf32>
    %50 = vector.shape_cast %47 : vector<32x256xf32> to vector<1x32x256xf32>
    tpu.vector_store %arg8[%c0_38, %c0_39, %c0_40], %50 {strides = array<i32>} : memref<2x32x256xf32, #tpu.memory_space<vmem>>, vector<1x32x256xf32>,
    %c1_41 = arith.constant 1 : index
    %c0_42 = arith.constant 0 : index
    %c0_43 = arith.constant 0 : index
    %51 = vector.load %arg1[%c1_41, %c0_42, %c0_43] : memref<2x16x64xf32, #tpu.memory_space<vmem>>, vector<1x16x64xf32>
    %52 = vector.shape_cast %51 : vector<1x16x64xf32> to vector<16x64xf32>
    %c0_44 = arith.constant 0 : index
    %c0_45 = arith.constant 0 : index
    %53 = vector.load %arg2[%c0_44, %c0_45] : memref<64x136xf32, #tpu.memory_space<vmem>>, vector<64x136xf32>
    %cst_46 = arith.constant dense<0.000000e+00> : vector<16x136xf32>
    %54 = tpu.matmul %52, %53, %cst_46 {dimension_numbers = #tpu.dot_dimension_numbers<[1], [0], [0], [1], [0, 0, 1, 1], [], []>} : vector<16x64xf32>, vector<64x136xf32>, vector<16x136xf32> -> vector<16x136xf32>
    %c0_47 = arith.constant 0 : index
    %c0_48 = arith.constant 0 : index
    %c0_49 = arith.constant 0 : index
    %55 = vector.load %arg4[%c0_47, %c0_48, %c0_49] : memref<3x136x68xf32, #tpu.memory_space<vmem>>, vector<1x136x68xf32>
    %56 = vector.shape_cast %55 : vector<1x136x68xf32> to vector<136x68xf32>
    %cst_50 = arith.constant dense<0.000000e+00> : vector<16x68xf32>
    %57 = tpu.matmul %54, %56, %cst_50 {dimension_numbers = #tpu.dot_dimension_numbers<[1], [0], [0], [1], [0, 0, 1, 1], [], []>} : vector<16x136xf32>, vector<136x68xf32>, vector<16x68xf32> -> vector<16x68xf32>
    %c1_51 = arith.constant 1 : index
    %c0_52 = arith.constant 0 : index
    %c0_53 = arith.constant 0 : index
    %58 = vector.load %arg4[%c1_51, %c0_52, %c0_53] : memref<3x136x68xf32, #tpu.memory_space<vmem>>, vector<1x136x68xf32>
    %59 = vector.shape_cast %58 : vector<1x136x68xf32> to vector<136x68xf32>
    %cst_54 = arith.constant dense<0.000000e+00> : vector<16x68xf32>
    %60 = tpu.matmul %54, %59, %cst_54 {dimension_numbers = #tpu.dot_dimension_numbers<[1], [0], [0], [1], [0, 0, 1, 1], [], []>} : vector<16x136xf32>, vector<136x68xf32>, vector<16x68xf32> -> vector<16x68xf32>
    %c2_55 = arith.constant 2 : index
    %c0_56 = arith.constant 0 : index
    %c0_57 = arith.constant 0 : index
    %61 = vector.load %arg4[%c2_55, %c0_56, %c0_57] : memref<3x136x68xf32, #tpu.memory_space<vmem>>, vector<1x136x68xf32>
    %62 = vector.shape_cast %61 : vector<1x136x68xf32> to vector<136x68xf32>
    %cst_58 = arith.constant dense<0.000000e+00> : vector<16x68xf32>
    %63 = tpu.matmul %54, %62, %cst_58 {dimension_numbers = #tpu.dot_dimension_numbers<[1], [0], [0], [1], [0, 0, 1, 1], [], []>} : vector<16x136xf32>, vector<136x68xf32>, vector<16x68xf32> -> vector<16x68xf32>
    %64 = tpu.concatenate %57, %60, %63 in 0 : vector<16x68xf32>, vector<16x68xf32>, vector<16x68xf32> -> vector<48x68xf32>
    %c0_59 = arith.constant 0 : index
    %c0_60 = arith.constant 0 : index
    %65 = vector.load %arg3[%c0_59, %c0_60] : memref<32x48xf32, #tpu.memory_space<vmem>>, vector<32x48xf32>
    %cst_61 = arith.constant dense<0.000000e+00> : vector<32x68xf32>
    %66 = tpu.matmul %65, %64, %cst_61 {dimension_numbers = #tpu.dot_dimension_numbers<[1], [0], [0], [1], [0, 0, 1, 1], [], []>} : vector<32x48xf32>, vector<48x68xf32>, vector<32x68xf32> -> vector<32x68xf32>
    %c0_62 = arith.constant 0 : index
    %c0_63 = arith.constant 0 : index
    %67 = vector.load %arg5[%c0_62, %c0_63] : memref<1x68xf32, #tpu.memory_space<vmem>>, vector<1x68xf32>
    %68 = vector.broadcast %67 : vector<1x68xf32> to vector<32x68xf32>
    %69 = arith.addf %66, %68 : vector<32x68xf32>
    %cst_64 = arith.constant 0.000000e+00 : f32
    %70 = vector.broadcast %cst_64 : f32 to vector<32x68xf32>
    %71 = arith.maximumf %69, %70 : vector<32x68xf32>
    %72 = tpu.iota {dimensions = array<i32: 0>} : vector<32x68xi32>
    %c0_i32_65 = arith.constant 0 : i32
    %73 = vector.broadcast %c0_i32_65 : i32 to vector<32x68xi32>
    %74 = arith.cmpi eq, %72, %73 : vector<32x68xi32>
    %c1_i32_66 = arith.constant 1 : i32
    %75 = tpu.dynamic_rotate %71 by %c1_i32_66 dim 0 : vector<32x68xf32>, i32 -> vector<32x68xf32>
    %cst_67 = arith.constant 0.000000e+00 : f32
    %76 = vector.broadcast %cst_67 : f32 to vector<32x68xf32>
    %77 = arith.select %74, %76, %75 : vector<32x68xi1>, vector<32x68xf32>
    %c31_i32_68 = arith.constant 31 : i32
    %78 = vector.broadcast %c31_i32_68 : i32 to vector<32x68xi32>
    %79 = arith.cmpi eq, %72, %78 : vector<32x68xi32>
    %c31_i32_69 = arith.constant 31 : i32
    %80 = tpu.dynamic_rotate %71 by %c31_i32_69 dim 0 : vector<32x68xf32>, i32 -> vector<32x68xf32>
    %cst_70 = arith.constant 0.000000e+00 : f32
    %81 = vector.broadcast %cst_70 : f32 to vector<32x68xf32>
    %82 = arith.select %79, %81, %80 : vector<32x68xi1>, vector<32x68xf32>
    %c0_71 = arith.constant 0 : index
    %c0_72 = arith.constant 0 : index
    %c0_73 = arith.constant 0 : index
    %83 = vector.load %arg6[%c0_71, %c0_72, %c0_73] : memref<3x68x256xf32, #tpu.memory_space<vmem>>, vector<1x68x256xf32>
    %84 = vector.shape_cast %83 : vector<1x68x256xf32> to vector<68x256xf32>
    %cst_74 = arith.constant dense<0.000000e+00> : vector<32x256xf32>
    %85 = tpu.matmul %77, %84, %cst_74 {dimension_numbers = #tpu.dot_dimension_numbers<[1], [0], [0], [1], [0, 0, 1, 1], [], []>} : vector<32x68xf32>, vector<68x256xf32>, vector<32x256xf32> -> vector<32x256xf32>
    %c1_75 = arith.constant 1 : index
    %c0_76 = arith.constant 0 : index
    %c0_77 = arith.constant 0 : index
    %86 = vector.load %arg6[%c1_75, %c0_76, %c0_77] : memref<3x68x256xf32, #tpu.memory_space<vmem>>, vector<1x68x256xf32>
    %87 = vector.shape_cast %86 : vector<1x68x256xf32> to vector<68x256xf32>
    %cst_78 = arith.constant dense<0.000000e+00> : vector<32x256xf32>
    %88 = tpu.matmul %71, %87, %cst_78 {dimension_numbers = #tpu.dot_dimension_numbers<[1], [0], [0], [1], [0, 0, 1, 1], [], []>} : vector<32x68xf32>, vector<68x256xf32>, vector<32x256xf32> -> vector<32x256xf32>
    %89 = arith.addf %85, %88 : vector<32x256xf32>
    %c2_79 = arith.constant 2 : index
    %c0_80 = arith.constant 0 : index
    %c0_81 = arith.constant 0 : index
    %90 = vector.load %arg6[%c2_79, %c0_80, %c0_81] : memref<3x68x256xf32, #tpu.memory_space<vmem>>, vector<1x68x256xf32>
    %91 = vector.shape_cast %90 : vector<1x68x256xf32> to vector<68x256xf32>
    %cst_82 = arith.constant dense<0.000000e+00> : vector<32x256xf32>
    %92 = tpu.matmul %82, %91, %cst_82 {dimension_numbers = #tpu.dot_dimension_numbers<[1], [0], [0], [1], [0, 0, 1, 1], [], []>} : vector<32x68xf32>, vector<68x256xf32>, vector<32x256xf32> -> vector<32x256xf32>
    %93 = arith.addf %89, %92 : vector<32x256xf32>
    %c0_83 = arith.constant 0 : index
    %c0_84 = arith.constant 0 : index
    %94 = vector.load %arg7[%c0_83, %c0_84] : memref<1x256xf32, #tpu.memory_space<vmem>>, vector<1x256xf32>
    %95 = vector.broadcast %94 : vector<1x256xf32> to vector<32x256xf32>
    %96 = arith.addf %93, %95 : vector<32x256xf32>
    %cst_85 = arith.constant 0.000000e+00 : f32
    %97 = vector.broadcast %cst_85 : f32 to vector<32x256xf32>
    %98 = arith.maximumf %96, %97 : vector<32x256xf32>
    %c1_86 = arith.constant 1 : index
    %c0_87 = arith.constant 0 : index
    %c0_88 = arith.constant 0 : index
    %99 = vector.load %arg8[%c1_86, %c0_87, %c0_88] : memref<2x32x256xf32, #tpu.memory_space<vmem>>, vector<1x32x256xf32>
    %100 = vector.shape_cast %99 : vector<1x32x256xf32> to vector<32x256xf32>
    %101 = vector.shape_cast %98 : vector<32x256xf32> to vector<1x32x256xf32>
    tpu.vector_store %arg8[%c1_86, %c0_87, %c0_88], %101 {strides = array<i32>} : memref<2x32x256xf32, #tpu.memory_space<vmem>>, vector<1x32x256xf32>,
    return
  }
  func.func @transform_0(%arg0: i32) -> (i32, i32, i32) {
    %c0_i32 = arith.constant 0 : i32
    %c0_i32_0 = arith.constant 0 : i32
    %c0_i32_1 = arith.constant 0 : i32
    return %arg0, %c0_i32, %c0_i32_0 : i32, i32, i32
  }
  func.func @transform_1(%arg0: i32) -> (i32, i32) {
    %c0_i32 = arith.constant 0 : i32
    %c0_i32_0 = arith.constant 0 : i32
    %c0_i32_1 = arith.constant 0 : i32
    return %c0_i32, %c0_i32_0 : i32, i32
  }
  func.func @transform_2(%arg0: i32) -> (i32, i32) {
    %c0_i32 = arith.constant 0 : i32
    %c0_i32_0 = arith.constant 0 : i32
    %c0_i32_1 = arith.constant 0 : i32
    return %c0_i32, %c0_i32_0 : i32, i32
  }
  func.func @transform_3(%arg0: i32) -> (i32, i32, i32) {
    %c0_i32 = arith.constant 0 : i32
    %c0_i32_0 = arith.constant 0 : i32
    %c0_i32_1 = arith.constant 0 : i32
    %c0_i32_2 = arith.constant 0 : i32
    return %c0_i32, %c0_i32_0, %c0_i32_1 : i32, i32, i32
  }
  func.func @transform_4(%arg0: i32) -> (i32, i32) {
    %c0_i32 = arith.constant 0 : i32
    %c0_i32_0 = arith.constant 0 : i32
    %c0_i32_1 = arith.constant 0 : i32
    return %c0_i32, %c0_i32_0 : i32, i32
  }
  func.func @transform_5(%arg0: i32) -> (i32, i32, i32) {
    %c0_i32 = arith.constant 0 : i32
    %c0_i32_0 = arith.constant 0 : i32
    %c0_i32_1 = arith.constant 0 : i32
    %c0_i32_2 = arith.constant 0 : i32
    return %c0_i32, %c0_i32_0, %c0_i32_1 : i32, i32, i32
  }
  func.func @transform_6(%arg0: i32) -> (i32, i32) {
    %c0_i32 = arith.constant 0 : i32
    %c0_i32_0 = arith.constant 0 : i32
    %c0_i32_1 = arith.constant 0 : i32
    return %c0_i32, %c0_i32_0 : i32, i32
  }
  func.func @transform_7(%arg0: i32) -> (i32, i32, i32) {
    %c0_i32 = arith.constant 0 : i32
    %c0_i32_0 = arith.constant 0 : i32
    %c0_i32_1 = arith.constant 0 : i32
    return %arg0, %c0_i32, %c0_i32_0 : i32, i32, i32
  }
}

</mosaic_0001>

<llo_original>
// kernel: conv_up_forward.1
$region0: #{conv_up_forward.1}
  #allocation0 [shape = 'u32[]', space=smem, size = 0x4, offset = 0x4, fixed_abs, tag = 'smem constant byte address 0x4 - core index']
  #allocation1 [shape = 'u32[144,128]{1,0:T(1,128)}', space=vmem, size = 0x12000, scoped, tag = 'internal scratch']
  %s0 = inlined_call_operand.vmem [shape: f32[2,16,64], index: 0, kind: input, shape index: {}]
  %s1 = inlined_call_operand.hbm [shape: f32[64,136], index: 1, kind: input, shape index: {}]
  %s2 = inlined_call_operand.hbm [shape: f32[32,48], index: 2, kind: input, shape index: {}]
  %s3 = inlined_call_operand.hbm [shape: f32[3,136,68], index: 3, kind: input, shape index: {}]
  %s4 = inlined_call_operand.vmem [shape: f32[1,68], index: 4, kind: input, shape index: {}]
  %s5 = inlined_call_operand.vmem [shape: f32[3,68,256], index: 5, kind: input, shape index: {}]
  %s6 = inlined_call_operand.vmem [shape: f32[1,256], index: 6, kind: input, shape index: {}]
  %s7 = inlined_call_operand.vmem [shape: f32[2,32,256], index: 7, kind: output, shape index: {}]
  %s8 = sld [smem:[#allocation0]]
  $region50: #{conv_up_forward.1} parent=0
    _
  %s10 = ssub.s32 1, %s8
  %s11 = scalar_select 0, %s10, %s8
  $region1: #{conv_up_forward.1} parent=0
    #allocation2 [shape = 'u8[65536]{0}', space=vmem, size = 0x10000, scoped, tag = 'input window, operand 1, single buffered']
    #allocation3 [shape = 's32[1]{0}', space=sflag, size = 0x4, scoped, tag = 'scoped memory for conv_up_forward.1']
    #allocation4 [shape = 'u8[16384]{0}', space=vmem, size = 0x4000, scoped, tag = 'input window, operand 2, single buffered']
    #allocation5 [shape = 's32[1]{0}', space=sflag, size = 0x4, scoped, tag = 'scoped memory for conv_up_forward.1']
    #allocation6 [shape = 'u8[208896]{0}', space=vmem, size = 0x33000, scoped, tag = 'input window, operand 3, single buffered']
    %12 = vsyncpa [#allocation3], 0
    %13 = vsyncpa [#allocation5], 0
    // Predicated region
    $region2: #{conv_up_forward.1} parent=1 // pred_check
      _
    $region3: #{conv_up_forward.1} parent=1 // pred_check_branch
      %15 = sbr.rel (0) target = $region5
    $region4: #{conv_up_forward.1} parent=1 // pred_region
      _
    $region5: #{conv_up_forward.1} parent=1 // pred_fallthru
      _
    // Predicated region
    $region6: #{conv_up_forward.1} parent=1 // pred_check
      _
    $region7: #{conv_up_forward.1} parent=1 // pred_check_branch
      %17 = sbr.rel (0) target = $region9
    $region8: #{conv_up_forward.1} parent=1 // pred_region
      %s19 = ssub.s32 2048, 2048
      %20 = vsyncadd [#allocation3], %s19
      %s21 = sshll.u32 [#allocation2], 4
      %s22 = int_to_ptr.vmem [resolvable:$true] %s21
      %27 = dma.hbm_to_vmem [thread:$0]  %s1, 2048, %s22, [#allocation3], 256, 256, 16
    $region9: #{conv_up_forward.1} parent=1 // pred_fallthru
      _
    // Predicated region
    $region10: #{conv_up_forward.1} parent=1 // pred_check
      _
    $region11: #{conv_up_forward.1} parent=1 // pred_check_branch
      %29 = sbr.rel (0) target = $region13
    $region12: #{conv_up_forward.1} parent=1 // pred_region
      %s31 = ssub.s32 512, 512
      %32 = vsyncadd [#allocation5], %s31
      %s33 = sshll.u32 [#allocation4], 4
      %s34 = int_to_ptr.vmem [resolvable:$true] %s33
      %39 = dma.hbm_to_vmem [thread:$0]  %s2, 512, %s34, [#allocation5], 128, 128, 8
    $region13: #{conv_up_forward.1} parent=1 // pred_fallthru
      _
    // Predicated region
    $region14: #{conv_up_forward.1} parent=1 // pred_check
      _
    $region15: #{conv_up_forward.1} parent=1 // pred_check_branch
      %41 = sbr.rel (0) target = $region17
    $region16: #{conv_up_forward.1} parent=1 // pred_region
      %s43 = ssub.s32 6528, 6528
      %44 = vsyncadd [#allocation5], %s43
      %s45 = sshll.u32 [#allocation6], 4
      %s46 = int_to_ptr.vmem [resolvable:$true] %s45
      %51 = dma.hbm_to_vmem [thread:$0]  %s3, 6528, %s46, [#allocation5], 128, 128, 8
    $region17: #{conv_up_forward.1} parent=1 // pred_fallthru
      _
    // Predicated region
    $region18: #{conv_up_forward.1} parent=1 // pred_check
      _
    $region19: #{conv_up_forward.1} parent=1 // pred_check_branch
      %53 = sbr.rel (0) target = $region21
    $region20: #{conv_up_forward.1} parent=1 // pred_region
      _
    $region21: #{conv_up_forward.1} parent=1 // pred_fallthru
      _
    // Predicated region
    $region22: #{conv_up_forward.1} parent=1 // pred_check
      _
    $region23: #{conv_up_forward.1} parent=1 // pred_check_branch
      %55 = sbr.rel (0) target = $region25
    $region24: #{conv_up_forward.1} parent=1 // pred_region
      _
    $region25: #{conv_up_forward.1} parent=1 // pred_fallthru
      _
    // Predicated region
    $region26: #{conv_up_forward.1} parent=1 // pred_check
      _
    $region27: #{conv_up_forward.1} parent=1 // pred_check_branch
      %57 = sbr.rel (0) target = $region29
    $region28: #{conv_up_forward.1} parent=1 // pred_region
      _
    $region29: #{conv_up_forward.1} parent=1 // pred_fallthru
      _
    // Predicated region
    $region30: #{conv_up_forward.1} parent=1 // pred_check
      _
    $region31: #{conv_up_forward.1} parent=1 // pred_check_branch
      %59 = sbr.rel (0) target = $region33
    $region32: #{conv_up_forward.1} parent=1 // pred_region
      %60 = dma.done [#allocation3], 2048
    $region33: #{conv_up_forward.1} parent=1 // pred_fallthru
      _
    // Predicated region
    $region34: #{conv_up_forward.1} parent=1 // pred_check
      _
    $region35: #{conv_up_forward.1} parent=1 // pred_check_branch
      %62 = sbr.rel (0) target = $region37
    $region36: #{conv_up_forward.1} parent=1 // pred_region
      %63 = dma.done [#allocation5], 512
    $region37: #{conv_up_forward.1} parent=1 // pred_fallthru
      _
    // Predicated region
    $region38: #{conv_up_forward.1} parent=1 // pred_check
      _
    $region39: #{conv_up_forward.1} parent=1 // pred_check_branch
      %65 = sbr.rel (0) target = $region41
    $region40: #{conv_up_forward.1} parent=1 // pred_region
      %66 = dma.done [#allocation5], 6528
    $region41: #{conv_up_forward.1} parent=1 // pred_fallthru
      _
    %v67 = vld [vmem:[%s0] sm:$0xff]
    %v68 = vld [vmem:[%s0 + $0x8] sm:$0xff]
    %v69 = vld [vmem:[#allocation2] sm:$0xff]
    %v70 = vld [vmem:[#allocation2 + $0x8] sm:$0xff]
    %v71 = vld [vmem:[#allocation2 + $0x10] sm:$0xff]
    %v72 = vld [vmem:[#allocation2 + $0x18] sm:$0xff]
    %v73 = vld [vmem:[#allocation2 + $0x20] sm:$0xff]
    %v74 = vld [vmem:[#allocation2 + $0x28] sm:$0xff]
    %v75 = vld [vmem:[#allocation2 + $0x30] sm:$0xff]
    %v76 = vld [vmem:[#allocation2 + $0x38] sm:$0xff]
    %v77 = vld [vmem:[#allocation2 + $0x40] sm:$0xff]
    %v78 = vld [vmem:[#allocation2 + $0x48] sm:$0xff]
    %v79 = vld [vmem:[#allocation2 + $0x50] sm:$0xff]
    %v80 = vld [vmem:[#allocation2 + $0x58] sm:$0xff]
    %v81 = vld [vmem:[#allocation2 + $0x60] sm:$0xff]
    %v82 = vld [vmem:[#allocation2 + $0x68] sm:$0xff]
    %v83 = vld [vmem:[#allocation2 + $0x70] sm:$0xff]
    %v84 = vld [vmem:[#allocation2 + $0x78] sm:$0xff]
    %vm85 = vcmask 523264
    %v87 = vsel %vm85, %v67, 0
    %v90 = vsel %vm85, %v68, 0
    %92 = vmatprep.subr.mxu0 %v70
    %93 = vmatpush1.msra.mxu0 %v69
    %94 = vmatprep.subr.mxu0 %v72
    %95 = vmatpush1.msra.mxu0 %v71
    %96 = vmatprep.subr.mxu0 %v74
    %97 = vmatpush1.msra.mxu0 %v73
    %98 = vmatprep.subr.mxu0 %v76
    %99 = vmatpush1.msra.mxu0 %v75
    %100 = vmatprep.subr.mxu0 %v78
    %101 = vmatpush1.msra.mxu0 %v77
    %102 = vmatprep.subr.mxu0 %v80
    %103 = vmatpush1.msra.mxu0 %v79
    %104 = vmatprep.subr.mxu0 %v82
    %105 = vmatpush1.msra.mxu0 %v81
    %106 = vmatprep.subr.mxu0 %v84
    %107 = vmatpush1.msra.mxu0 %v83
    %108 = vmatprep.subr.mxu0 0.0
    %109 = vmatpush1.msra.mxu0 0.0
    %110 = vmatprep.subr.mxu0 0.0
    %111 = vmatpush1.msra.mxu0 0.0
    %112 = vmatprep.subr.mxu0 0.0
    %113 = vmatpush1.msra.mxu0 0.0
    %114 = vmatprep.subr.mxu0 0.0
    %115 = vmatpush1.msra.mxu0 0.0
    %116 = vmatprep.subr.mxu0 0.0
    %117 = vmatpush1.msra.mxu0 0.0
    %118 = vmatprep.subr.mxu0 0.0
    %119 = vmatpush1.msra.mxu0 0.0
    %120 = vmatprep.subr.mxu0 0.0
    %121 = vmatpush1.msra.mxu0 0.0
    %122 = vmatprep.subr.mxu0 0.0
    %123 = vmatpush1.msra.mxu0 0.0
    %124 = vmatprep.subr.mxu0 0.0
    %125 = vmatpush1.msra.mxu0 0.0
    %126 = vmatprep.subr.mxu0 0.0
    %127 = vmatpush1.msra.mxu0 0.0
    %128 = vmatprep.subr.mxu0 0.0
    %129 = vmatpush1.msra.mxu0 0.0
    %130 = vmatprep.subr.mxu0 0.0
    %131 = vmatpush1.msra.mxu0 0.0
    %132 = vmatprep.subr.mxu0 0.0
    %133 = vmatpush1.msra.mxu0 0.0
    %134 = vmatprep.subr.mxu0 0.0
    %135 = vmatpush1.msra.mxu0 0.0
    %136 = vmatprep.subr.mxu0 0.0
    %137 = vmatpush1.msra.mxu0 0.0
    %138 = vmatprep.subr.mxu0 0.0
    %139 = vmatpush1.msra.mxu0 0.0
    %140 = vmatprep.subr.mxu0 0.0
    %141 = vmatpush1.msra.mxu0 0.0
    %142 = vmatprep.subr.mxu0 0.0
    %143 = vmatpush1.msra.mxu0 0.0
    %144 = vmatprep.subr.mxu0 0.0
    %145 = vmatpush1.msra.mxu0 0.0
    %146 = vmatprep.subr.mxu0 0.0
    %147 = vmatpush1.msra.mxu0 0.0
    %148 = vmatprep.subr.mxu0 0.0
    %149 = vmatpush1.msra.mxu0 0.0
    %150 = vmatprep.subr.mxu0 0.0
    %151 = vmatpush1.msra.mxu0 0.0
    %152 = vmatprep.subr.mxu0 0.0
    %153 = vmatpush1.msra.mxu0 0.0
    %154 = vmatprep.subr.mxu0 0.0
    %155 = vmatpush1.msra.mxu0 0.0
    %156 = vmatprep.mubr.f32.mxu0 0.0
    %157 = vmatmul.mubr.f32.gmra.mrb[0].mxu0 %v87
    %v158 = vpop.f32.mrb[0].mxu0
    %v159 = vadd.f32 0.0, %v158
    %v160 = vpop.f32.mrb[0].mxu0
    %v161 = vadd.f32 0.0, %v160
    %162 = vmatprep.mubr.f32.mxu0 0.0
    %163 = vmatmul.mubr.f32.gmra.mrb[0].mxu0 %v90
    %v164 = vpop.f32.mrb[0].mxu0
    %v165 = vadd.f32 0.0, %v164
    %v166 = vpop.f32.mrb[0].mxu0
    %v167 = vadd.f32 0.0, %v166
    %168 = vdwg.mxu0
    %v169 = vld [vmem:[#allocation6] sm:$0xff]
    %v170 = vld [vmem:[#allocation6 + $0x8] sm:$0xff]
    %v171 = vld [vmem:[#allocation6 + $0x10] sm:$0xff]
    %v172 = vld [vmem:[#allocation6 + $0x18] sm:$0xff]
    %v173 = vld [vmem:[#allocation6 + $0x20] sm:$0xff]
    %v174 = vld [vmem:[#allocation6 + $0x28] sm:$0xff]
    %v175 = vld [vmem:[#allocation6 + $0x30] sm:$0xff]
    %v176 = vld [vmem:[#allocation6 + $0x38] sm:$0xff]
    %v177 = vld [vmem:[#allocation6 + $0x40] sm:$0xff]
    %v178 = vld [vmem:[#allocation6 + $0x48] sm:$0xff]
    %v179 = vld [vmem:[#allocation6 + $0x50] sm:$0xff]
    %v180 = vld [vmem:[#allocation6 + $0x58] sm:$0xff]
    %v181 = vld [vmem:[#allocation6 + $0x60] sm:$0xff]
    %v182 = vld [vmem:[#allocation6 + $0x68] sm:$0xff]
    %v183 = vld [vmem:[#allocation6 + $0x70] sm:$0xff]
    %v184 = vld [vmem:[#allocation6 + $0x78] sm:$0xff]
    %v185 = vld [vmem:[#allocation6 + $0x80] sm:$0xff]
    %vm186 = vcmask 64512
    %v188 = vsel %vm186, %v161, 0
    %v191 = vsel %vm186, %v167, 0
    %193 = vmatprep.subr.mxu0 0.0
    %194 = vmatpush1.msra.mxu0 %v169
    %195 = vmatprep.subr.mxu0 0.0
    %196 = vmatpush1.msra.mxu0 %v170
    %197 = vmatprep.subr.mxu0 0.0
    %198 = vmatpush1.msra.mxu0 %v171
    %199 = vmatprep.subr.mxu0 0.0
    %200 = vmatpush1.msra.mxu0 %v172
    %201 = vmatprep.subr.mxu0 0.0
    %202 = vmatpush1.msra.mxu0 %v173
    %203 = vmatprep.subr.mxu0 0.0
    %204 = vmatpush1.msra.mxu0 %v174
    %205 = vmatprep.subr.mxu0 0.0
    %206 = vmatpush1.msra.mxu0 %v175
    %207 = vmatprep.subr.mxu0 0.0
    %208 = vmatpush1.msra.mxu0 %v176
    %209 = vmatprep.subr.mxu0 0.0
    %210 = vmatpush1.msra.mxu0 %v177
    %211 = vmatprep.subr.mxu0 0.0
    %212 = vmatpush1.msra.mxu0 %v178
    %213 = vmatprep.subr.mxu0 0.0
    %214 = vmatpush1.msra.mxu0 %v179
    %215 = vmatprep.subr.mxu0 0.0
    %216 = vmatpush1.msra.mxu0 %v180
    %217 = vmatprep.subr.mxu0 0.0
    %218 = vmatpush1.msra.mxu0 %v181
    %219 = vmatprep.subr.mxu0 0.0
    %220 = vmatpush1.msra.mxu0 %v182
    %221 = vmatprep.subr.mxu0 0.0
    %222 = vmatpush1.msra.mxu0 %v183
    %223 = vmatprep.subr.mxu0 0.0
    %224 = vmatpush1.msra.mxu0 %v184
    %225 = vmatprep.subr.mxu0 0.0
    %226 = vmatpush1.msra.mxu0 %v185
    %227 = vmatprep.subr.mxu0 0.0
    %228 = vmatpush1.msra.mxu0 0.0
    %229 = vmatprep.subr.mxu0 0.0
    %230 = vmatpush1.msra.mxu0 0.0
    %231 = vmatprep.subr.mxu0 0.0
    %232 = vmatpush1.msra.mxu0 0.0
    %233 = vmatprep.subr.mxu0 0.0
    %234 = vmatpush1.msra.mxu0 0.0
    %235 = vmatprep.subr.mxu0 0.0
    %236 = vmatpush1.msra.mxu0 0.0
    %237 = vmatprep.subr.mxu0 0.0
    %238 = vmatpush1.msra.mxu0 0.0
    %239 = vmatprep.subr.mxu0 0.0
    %240 = vmatpush1.msra.mxu0 0.0
    %241 = vmatprep.subr.mxu0 0.0
    %242 = vmatpush1.msra.mxu0 0.0
    %243 = vmatprep.subr.mxu0 0.0
    %244 = vmatpush1.msra.mxu0 0.0
    %245 = vmatprep.subr.mxu0 0.0
    %246 = vmatpush1.msra.mxu0 0.0
    %247 = vmatprep.subr.mxu0 0.0
    %248 = vmatpush1.msra.mxu0 0.0
    %249 = vmatprep.subr.mxu0 0.0
    %250 = vmatpush1.msra.mxu0 0.0
    %251 = vmatprep.subr.mxu0 0.0
    %252 = vmatpush1.msra.mxu0 0.0
    %253 = vmatprep.subr.mxu0 0.0
    %254 = vmatpush1.msra.mxu0 0.0
    %255 = vmatprep.subr.mxu0 0.0
    %256 = vmatpush1.msra.mxu0 0.0
    %257 = vmatprep.mubr.f32.mxu0 %v188
    %258 = vmatmul.mubr.f32.gmra.mrb[0].mxu0 %v159
    %v259 = vpop.f32.mrb[0].mxu0
    %v260 = vadd.f32 0.0, %v259
    %v261 = vpop.f32.mrb[0].mxu0
    %262 = vmatprep.mubr.f32.mxu0 %v191
    %263 = vmatmul.mubr.f32.gmra.mrb[0].mxu0 %v165
    %v264 = vpop.f32.mrb[0].mxu0
    %v265 = vadd.f32 0.0, %v264
    %v266 = vpop.f32.mrb[0].mxu0
    %267 = vdwg.mxu0
    %s268 = scalar_lea.vmem [#allocation6], 136
    %v269 = vld [vmem:[%s268] sm:$0xff]
    %v270 = vld [vmem:[%s268 + $0x8] sm:$0xff]
    %v271 = vld [vmem:[%s268 + $0x10] sm:$0xff]
    %v272 = vld [vmem:[%s268 + $0x18] sm:$0xff]
    %v273 = vld [vmem:[%s268 + $0x20] sm:$0xff]
    %v274 = vld [vmem:[%s268 + $0x28] sm:$0xff]
    %v275 = vld [vmem:[%s268 + $0x30] sm:$0xff]
    %v276 = vld [vmem:[%s268 + $0x38] sm:$0xff]
    %v277 = vld [vmem:[%s268 + $0x40] sm:$0xff]
    %v278 = vld [vmem:[%s268 + $0x48] sm:$0xff]
    %v279 = vld [vmem:[%s268 + $0x50] sm:$0xff]
    %v280 = vld [vmem:[%s268 + $0x58] sm:$0xff]
    %v281 = vld [vmem:[%s268 + $0x60] sm:$0xff]
    %v282 = vld [vmem:[%s268 + $0x68] sm:$0xff]
    %v283 = vld [vmem:[%s268 + $0x70] sm:$0xff]
    %v284 = vld [vmem:[%s268 + $0x78] sm:$0xff]
    %v285 = vld [vmem:[%s268 + $0x80] sm:$0xff]
    %286 = vmatprep.subr.mxu0 0.0
    %287 = vmatpush1.msra.mxu0 %v269
    %288 = vmatprep.subr.mxu0 0.0
    %289 = vmatpush1.msra.mxu0 %v270
    %290 = vmatprep.subr.mxu0 0.0
    %291 = vmatpush1.msra.mxu0 %v271
    %292 = vmatprep.subr.mxu0 0.0
    %293 = vmatpush1.msra.mxu0 %v272
    %294 = vmatprep.subr.mxu0 0.0
    %295 = vmatpush1.msra.mxu0 %v273
    %296 = vmatprep.subr.mxu0 0.0
    %297 = vmatpush1.msra.mxu0 %v274
    %298 = vmatprep.subr.mxu0 0.0
    %299 = vmatpush1.msra.mxu0 %v275
    %300 = vmatprep.subr.mxu0 0.0
    %301 = vmatpush1.msra.mxu0 %v276
    %302 = vmatprep.subr.mxu0 0.0
    %303 = vmatpush1.msra.mxu0 %v277
    %304 = vmatprep.subr.mxu0 0.0
    %305 = vmatpush1.msra.mxu0 %v278
    %306 = vmatprep.subr.mxu0 0.0
    %307 = vmatpush1.msra.mxu0 %v279
    %308 = vmatprep.subr.mxu0 0.0
    %309 = vmatpush1.msra.mxu0 %v280
    %310 = vmatprep.subr.mxu0 0.0
    %311 = vmatpush1.msra.mxu0 %v281
    %312 = vmatprep.subr.mxu0 0.0
    %313 = vmatpush1.msra.mxu0 %v282
    %314 = vmatprep.subr.mxu0 0.0
    %315 = vmatpush1.msra.mxu0 %v283
    %316 = vmatprep.subr.mxu0 0.0
    %317 = vmatpush1.msra.mxu0 %v284
    %318 = vmatprep.subr.mxu0 0.0
    %319 = vmatpush1.msra.mxu0 %v285
    %320 = vmatprep.subr.mxu0 0.0
    %321 = vmatpush1.msra.mxu0 0.0
    %322 = vmatprep.subr.mxu0 0.0
    %323 = vmatpush1.msra.mxu0 0.0
    %324 = vmatprep.subr.mxu0 0.0
    %325 = vmatpush1.msra.mxu0 0.0
    %326 = vmatprep.subr.mxu0 0.0
    %327 = vmatpush1.msra.mxu0 0.0
    %328 = vmatprep.subr.mxu0 0.0
    %329 = vmatpush1.msra.mxu0 0.0
    %330 = vmatprep.subr.mxu0 0.0
    %331 = vmatpush1.msra.mxu0 0.0
    %332 = vmatprep.subr.mxu0 0.0
    %333 = vmatpush1.msra.mxu0 0.0
    %334 = vmatprep.subr.mxu0 0.0
    %335 = vmatpush1.msra.mxu0 0.0
    %336 = vmatprep.subr.mxu0 0.0
    %337 = vmatpush1.msra.mxu0 0.0
    %338 = vmatprep.subr.mxu0 0.0
    %339 = vmatpush1.msra.mxu0 0.0
    %340 = vmatprep.subr.mxu0 0.0
    %341 = vmatpush1.msra.mxu0 0.0
    %342 = vmatprep.subr.mxu0 0.0
    %343 = vmatpush1.msra.mxu0 0.0
    %344 = vmatprep.subr.mxu0 0.0
    %345 = vmatpush1.msra.mxu0 0.0
    %346 = vmatprep.subr.mxu0 0.0
    %347 = vmatpush1.msra.mxu0 0.0
    %348 = vmatprep.subr.mxu0 0.0
    %349 = vmatpush1.msra.mxu0 0.0
    %350 = vmatprep.mubr.f32.mxu0 %v188
    %351 = vmatmul.mubr.f32.gmra.mrb[0].mxu0 %v159
    %v352 = vpop.f32.mrb[0].mxu0
    %v353 = vadd.f32 0.0, %v352
    %v354 = vpop.f32.mrb[0].mxu0
    %355 = vmatprep.mubr.f32.mxu0 %v191
    %356 = vmatmul.mubr.f32.gmra.mrb[0].mxu0 %v165
    %v357 = vpop.f32.mrb[0].mxu0
    %v358 = vadd.f32 0.0, %v357
    %v359 = vpop.f32.mrb[0].mxu0
    %360 = vdwg.mxu0
    %s361 = scalar_lea.vmem [#allocation6], 272
    %v362 = vld [vmem:[%s361] sm:$0xff]
    %v363 = vld [vmem:[%s361 + $0x8] sm:$0xff]
    %v364 = vld [vmem:[%s361 + $0x10] sm:$0xff]
    %v365 = vld [vmem:[%s361 + $0x18] sm:$0xff]
    %v366 = vld [vmem:[%s361 + $0x20] sm:$0xff]
    %v367 = vld [vmem:[%s361 + $0x28] sm:$0xff]
    %v368 = vld [vmem:[%s361 + $0x30] sm:$0xff]
    %v369 = vld [vmem:[%s361 + $0x38] sm:$0xff]
    %v370 = vld [vmem:[%s361 + $0x40] sm:$0xff]
    %v371 = vld [vmem:[%s361 + $0x48] sm:$0xff]
    %v372 = vld [vmem:[%s361 + $0x50] sm:$0xff]
    %v373 = vld [vmem:[%s361 + $0x58] sm:$0xff]
    %v374 = vld [vmem:[%s361 + $0x60] sm:$0xff]
    %v375 = vld [vmem:[%s361 + $0x68] sm:$0xff]
    %v376 = vld [vmem:[%s361 + $0x70] sm:$0xff]
    %v377 = vld [vmem:[%s361 + $0x78] sm:$0xff]
    %v378 = vld [vmem:[%s361 + $0x80] sm:$0xff]
    %379 = vmatprep.subr.mxu0 0.0
    %380 = vmatpush1.msra.mxu0 %v362
    %381 = vmatprep.subr.mxu0 0.0
    %382 = vmatpush1.msra.mxu0 %v363
    %383 = vmatprep.subr.mxu0 0.0
    %384 = vmatpush1.msra.mxu0 %v364
    %385 = vmatprep.subr.mxu0 0.0
    %386 = vmatpush1.msra.mxu0 %v365
    %387 = vmatprep.subr.mxu0 0.0
    %388 = vmatpush1.msra.mxu0 %v366
    %389 = vmatprep.subr.mxu0 0.0
    %390 = vmatpush1.msra.mxu0 %v367
    %391 = vmatprep.subr.mxu0 0.0
    %392 = vmatpush1.msra.mxu0 %v368
    %393 = vmatprep.subr.mxu0 0.0
    %394 = vmatpush1.msra.mxu0 %v369
    %395 = vmatprep.subr.mxu0 0.0
    %396 = vmatpush1.msra.mxu0 %v370
    %397 = vmatprep.subr.mxu0 0.0
    %398 = vmatpush1.msra.mxu0 %v371
    %399 = vmatprep.subr.mxu0 0.0
    %400 = vmatpush1.msra.mxu0 %v372
    %401 = vmatprep.subr.mxu0 0.0
    %402 = vmatpush1.msra.mxu0 %v373
    %403 = vmatprep.subr.mxu0 0.0
    %404 = vmatpush1.msra.mxu0 %v374
    %405 = vmatprep.subr.mxu0 0.0
    %406 = vmatpush1.msra.mxu0 %v375
    %407 = vmatprep.subr.mxu0 0.0
    %408 = vmatpush1.msra.mxu0 %v376
    %409 = vmatprep.subr.mxu0 0.0
    %410 = vmatpush1.msra.mxu0 %v377
    %411 = vmatprep.subr.mxu0 0.0
    %412 = vmatpush1.msra.mxu0 %v378
    %413 = vmatprep.subr.mxu0 0.0
    %414 = vmatpush1.msra.mxu0 0.0
    %415 = vmatprep.subr.mxu0 0.0
    %416 = vmatpush1.msra.mxu0 0.0
    %417 = vmatprep.subr.mxu0 0.0
    %418 = vmatpush1.msra.mxu0 0.0
    %419 = vmatprep.subr.mxu0 0.0
    %420 = vmatpush1.msra.mxu0 0.0
    %421 = vmatprep.subr.mxu0 0.0
    %422 = vmatpush1.msra.mxu0 0.0
    %423 = vmatprep.subr.mxu0 0.0
    %424 = vmatpush1.msra.mxu0 0.0
    %425 = vmatprep.subr.mxu0 0.0
    %426 = vmatpush1.msra.mxu0 0.0
    %427 = vmatprep.subr.mxu0 0.0
    %428 = vmatpush1.msra.mxu0 0.0
    %429 = vmatprep.subr.mxu0 0.0
    %430 = vmatpush1.msra.mxu0 0.0
    %431 = vmatprep.subr.mxu0 0.0
    %432 = vmatpush1.msra.mxu0 0.0
    %433 = vmatprep.subr.mxu0 0.0
    %434 = vmatpush1.msra.mxu0 0.0
    %435 = vmatprep.subr.mxu0 0.0
    %436 = vmatpush1.msra.mxu0 0.0
    %437 = vmatprep.subr.mxu0 0.0
    %438 = vmatpush1.msra.mxu0 0.0
    %439 = vmatprep.subr.mxu0 0.0
    %440 = vmatpush1.msra.mxu0 0.0
    %441 = vmatprep.subr.mxu0 0.0
    %442 = vmatpush1.msra.mxu0 0.0
    %443 = vmatprep.mubr.f32.mxu0 %v188
    %444 = vmatmul.mubr.f32.gmra.mrb[0].mxu0 %v159
    %v445 = vpop.f32.mrb[0].mxu0
    %v446 = vadd.f32 0.0, %v445
    %v447 = vpop.f32.mrb[0].mxu0
    %448 = vmatprep.mubr.f32.mxu0 %v191
    %449 = vmatmul.mubr.f32.gmra.mrb[0].mxu0 %v165
    %v450 = vpop.f32.mrb[0].mxu0
    %v451 = vadd.f32 0.0, %v450
    %v452 = vpop.f32.mrb[0].mxu0
    %453 = vdwg.mxu0
    %v454 = vld [vmem:[#allocation4] sm:$0xff]
    %v455 = vld [vmem:[#allocation4 + $0x8] sm:$0xff]
    %v456 = vld [vmem:[#allocation4 + $0x10] sm:$0xff]
    %v457 = vld [vmem:[#allocation4 + $0x18] sm:$0xff]
    %v458 = vld [vmem:[%s4] sm:$0x1]
    %v460 = vlaneseq
    %v461 = vshrl.u32 %v460, 7
    %v462 = vsub.s32 0, %v461
    %v463 = vrot.slane %v458, %v462
    %vm465 = vcmask 392192
    %v467 = vsel %vm465, %v454, 0
    %v470 = vsel %vm465, %v455, 0
    %v473 = vsel %vm465, %v456, 0
    %v476 = vsel %vm465, %v457, 0
    %478 = vmatprep.subr.mxu0 0.0
    %479 = vmatpush1.msra.mxu0 %v260
    %480 = vmatprep.subr.mxu0 0.0
    %481 = vmatpush1.msra.mxu0 %v265
    %482 = vmatprep.subr.mxu0 0.0
    %483 = vmatpush1.msra.mxu0 %v353
    %484 = vmatprep.subr.mxu0 0.0
    %485 = vmatpush1.msra.mxu0 %v358
    %486 = vmatprep.subr.mxu0 0.0
    %487 = vmatpush1.msra.mxu0 %v446
    %488 = vmatprep.subr.mxu0 0.0
    %489 = vmatpush1.msra.mxu0 %v451
    %490 = vmatprep.subr.mxu0 0.0
    %491 = vmatpush1.msra.mxu0 0.0
    %492 = vmatprep.subr.mxu0 0.0
    %493 = vmatpush1.msra.mxu0 0.0
    %494 = vmatprep.subr.mxu0 0.0
    %495 = vmatpush1.msra.mxu0 0.0
    %496 = vmatprep.subr.mxu0 0.0
    %497 = vmatpush1.msra.mxu0 0.0
    %498 = vmatprep.subr.mxu0 0.0
    %499 = vmatpush1.msra.mxu0 0.0
    %500 = vmatprep.subr.mxu0 0.0
    %501 = vmatpush1.msra.mxu0 0.0
    %502 = vmatprep.subr.mxu0 0.0
    %503 = vmatpush1.msra.mxu0 0.0
    %504 = vmatprep.subr.mxu0 0.0
    %505 = vmatpush1.msra.mxu0 0.0
    %506 = vmatprep.subr.mxu0 0.0
    %507 = vmatpush1.msra.mxu0 0.0
    %508 = vmatprep.subr.mxu0 0.0
    %509 = vmatpush1.msra.mxu0 0.0
    %510 = vmatprep.subr.mxu0 0.0
    %511 = vmatpush1.msra.mxu0 0.0
    %512 = vmatprep.subr.mxu0 0.0
    %513 = vmatpush1.msra.mxu0 0.0
    %514 = vmatprep.subr.mxu0 0.0
    %515 = vmatpush1.msra.mxu0 0.0
    %516 = vmatprep.subr.mxu0 0.0
    %517 = vmatpush1.msra.mxu0 0.0
    %518 = vmatprep.subr.mxu0 0.0
    %519 = vmatpush1.msra.mxu0 0.0
    %520 = vmatprep.subr.mxu0 0.0
    %521 = vmatpush1.msra.mxu0 0.0
    %522 = vmatprep.subr.mxu0 0.0
    %523 = vmatpush1.msra.mxu0 0.0
    %524 = vmatprep.subr.mxu0 0.0
    %525 = vmatpush1.msra.mxu0 0.0
    %526 = vmatprep.subr.mxu0 0.0
    %527 = vmatpush1.msra.mxu0 0.0
    %528 = vmatprep.subr.mxu0 0.0
    %529 = vmatpush1.msra.mxu0 0.0
    %530 = vmatprep.subr.mxu0 0.0
    %531 = vmatpush1.msra.mxu0 0.0
    %532 = vmatprep.subr.mxu0 0.0
    %533 = vmatpush1.msra.mxu0 0.0
    %534 = vmatprep.subr.mxu0 0.0
    %535 = vmatpush1.msra.mxu0 0.0
    %536 = vmatprep.subr.mxu0 0.0
    %537 = vmatpush1.msra.mxu0 0.0
    %538 = vmatprep.subr.mxu0 0.0
    %539 = vmatpush1.msra.mxu0 0.0
    %540 = vmatprep.subr.mxu0 0.0
    %541 = vmatpush1.msra.mxu0 0.0
    %542 = vmatprep.mubr.f32.mxu0 0.0
    %543 = vmatmul.mubr.f32.gmra.mrb[0].mxu0 %v467
    %v544 = vpop.f32.mrb[0].mxu0
    %v545 = vadd.f32 %v463, %v544
    %v546 = vpop.f32.mrb[0].mxu0
    %547 = vmatprep.mubr.f32.mxu0 0.0
    %548 = vmatmul.mubr.f32.gmra.mrb[0].mxu0 %v470
    %v549 = vpop.f32.mrb[0].mxu0
    %v550 = vadd.f32 %v463, %v549
    %v551 = vpop.f32.mrb[0].mxu0
    %552 = vmatprep.mubr.f32.mxu0 0.0
    %553 = vmatmul.mubr.f32.gmra.mrb[0].mxu0 %v473
    %v554 = vpop.f32.mrb[0].mxu0
    %v555 = vadd.f32 %v463, %v554
    %v556 = vpop.f32.mrb[0].mxu0
    %557 = vmatprep.mubr.f32.mxu0 0.0
    %558 = vmatmul.mubr.f32.gmra.mrb[0].mxu0 %v476
    %v559 = vpop.f32.mrb[0].mxu0
    %v560 = vadd.f32 %v463, %v559
    %v561 = vpop.f32.mrb[0].mxu0
    %562 = vdwg.mxu0
    %v563 = vmax.f32 %v545, 0.0
    %v564 = vmax.f32 %v550, 0.0
    %v565 = vmax.f32 %v555, 0.0
    %v566 = vmax.f32 %v560, 0.0
    %v567 = vlaneseq
    %v568 = vshrl.u32 %v567, 7
    %v569 = vadd.s32 %v568, 8
    %v570 = vadd.s32 %v568, 16
    %v571 = vadd.s32 %v568, 24
    %vm572 = vcmp.eq.s32.totalorder %v568, 0
    %vm573 = vcmp.eq.s32.totalorder %v569, 0
    %vm574 = vcmp.eq.s32.totalorder %v570, 0
    %vm575 = vcmp.eq.s32.totalorder %v571, 0
    %v576 = vrot.slane %v563, 7
    %v577 = vrot.slane %v564, 7
    %v578 = vrot.slane %v565, 7
    %v579 = vrot.slane %v566, 7
    %vm580 = vcmp.lt.s32.totalorder %v568, 1
    %v581 = vsel %vm580, %v578, %v579
    %v582 = vsel %vm580, %v577, %v578
    %v583 = vsel %vm580, %v576, %v577
    %v584 = vsel %vm580, %v579, %v576
    %v585 = vsel %vm572, 0.0, %v584
    %v586 = vsel %vm573, 0.0, %v583
    %v587 = vsel %vm574, 0.0, %v582
    %v588 = vsel %vm575, 0.0, %v581
    %vm589 = vcmp.eq.s32.totalorder %v568, 31
    %vm590 = vcmp.eq.s32.totalorder %v569, 31
    %vm591 = vcmp.eq.s32.totalorder %v570, 31
    %vm592 = vcmp.eq.s32.totalorder %v571, 31
    %v593 = vrot.slane %v563, 1
    %v594 = vrot.slane %v564, 1
    %v595 = vrot.slane %v565, 1
    %v596 = vrot.slane %v566, 1
    %vm597 = vcmp.lt.s32.totalorder %v568, 7
    %v598 = vsel %vm597, %v595, %v596
    %v599 = vsel %vm597, %v594, %v595
    %v600 = vsel %vm597, %v593, %v594
    %v601 = vsel %vm597, %v596, %v593
    %v602 = vsel %vm589, 0.0, %v600
    %v603 = vsel %vm590, 0.0, %v599
    %v604 = vsel %vm591, 0.0, %v598
    %v605 = vsel %vm592, 0.0, %v601
    %v606 = vld [vmem:[%s5] sm:$0xff]
    %v607 = vld [vmem:[%s5 + $0x8] sm:$0xff]
    %v608 = vld [vmem:[%s5 + $0x10] sm:$0xff]
    %v609 = vld [vmem:[%s5 + $0x18] sm:$0xff]
    %v610 = vld [vmem:[%s5 + $0x20] sm:$0xff]
    %v611 = vld [vmem:[%s5 + $0x28] sm:$0xff]
    %v612 = vld [vmem:[%s5 + $0x30] sm:$0xff]
    %v613 = vld [vmem:[%s5 + $0x38] sm:$0xff]
    %v614 = vld [vmem:[%s5 + $0x40] sm:$0xff]
    %v615 = vld [vmem:[%s5 + $0x48] sm:$0xff]
    %v616 = vld [vmem:[%s5 + $0x50] sm:$0xff]
    %v617 = vld [vmem:[%s5 + $0x58] sm:$0xff]
    %v618 = vld [vmem:[%s5 + $0x60] sm:$0xff]
    %v619 = vld [vmem:[%s5 + $0x68] sm:$0xff]
    %v620 = vld [vmem:[%s5 + $0x70] sm:$0xff]
    %v621 = vld [vmem:[%s5 + $0x78] sm:$0xff]
    %v622 = vld [vmem:[%s5 + $0x80] sm:$0xf]
    %v623 = vld [vmem:[%s5 + $0x88] sm:$0xf]
    %s624 = scalar_lea.vmem %s5, 144
    %v625 = vld [vmem:[%s624] sm:$0xff]
    %v626 = vld [vmem:[%s624 + $0x8] sm:$0xff]
    %v627 = vld [vmem:[%s624 + $0x10] sm:$0xff]
    %v628 = vld [vmem:[%s624 + $0x18] sm:$0xff]
    %v629 = vld [vmem:[%s624 + $0x20] sm:$0xff]
    %v630 = vld [vmem:[%s624 + $0x28] sm:$0xff]
    %v631 = vld [vmem:[%s624 + $0x30] sm:$0xff]
    %v632 = vld [vmem:[%s624 + $0x38] sm:$0xff]
    %v633 = vld [vmem:[%s624 + $0x40] sm:$0xff]
    %v634 = vld [vmem:[%s624 + $0x48] sm:$0xff]
    %v635 = vld [vmem:[%s624 + $0x50] sm:$0xff]
    %v636 = vld [vmem:[%s624 + $0x58] sm:$0xff]
    %v637 = vld [vmem:[%s624 + $0x60] sm:$0xff]
    %v638 = vld [vmem:[%s624 + $0x68] sm:$0xff]
    %v639 = vld [vmem:[%s624 + $0x70] sm:$0xff]
    %v640 = vld [vmem:[%s624 + $0x78] sm:$0xff]
    %v641 = vld [vmem:[%s624 + $0x80] sm:$0xf]
    %v642 = vld [vmem:[%s624 + $0x88] sm:$0xf]
    %vm643 = vcmask 556032
    %v645 = vsel %vm643, %v563, 0
    %v648 = vsel %vm643, %v564, 0
    %v651 = vsel %vm643, %v565, 0
    %v654 = vsel %vm643, %v566, 0
    %vm656 = vcmask 1043456
    %v658 = vsel %vm656, %v641, 0
    %v661 = vsel %vm656, %v642, 0
    %663 = vmatprep.subr.mxu0 %v626
    %664 = vmatpush1.msra.mxu0 %v625
    %665 = vmatprep.subr.mxu0 %v628
    %666 = vmatpush1.msra.mxu0 %v627
    %667 = vmatprep.subr.mxu0 %v630
    %668 = vmatpush1.msra.mxu0 %v629
    %669 = vmatprep.subr.mxu0 %v632
    %670 = vmatpush1.msra.mxu0 %v631
    %671 = vmatprep.subr.mxu0 %v634
    %672 = vmatpush1.msra.mxu0 %v633
    %673 = vmatprep.subr.mxu0 %v636
    %674 = vmatpush1.msra.mxu0 %v635
    %675 = vmatprep.subr.mxu0 %v638
    %676 = vmatpush1.msra.mxu0 %v637
    %677 = vmatprep.subr.mxu0 %v640
    %678 = vmatpush1.msra.mxu0 %v639
    %679 = vmatprep.subr.mxu0 %v661
    %680 = vmatpush1.msra.mxu0 %v658
    %681 = vmatprep.subr.mxu0 0.0
    %682 = vmatpush1.msra.mxu0 0.0
    %683 = vmatprep.subr.mxu0 0.0
    %684 = vmatpush1.msra.mxu0 0.0
    %685 = vmatprep.subr.mxu0 0.0
    %686 = vmatpush1.msra.mxu0 0.0
    %687 = vmatprep.subr.mxu0 0.0
    %688 = vmatpush1.msra.mxu0 0.0
    %689 = vmatprep.subr.mxu0 0.0
    %690 = vmatpush1.msra.mxu0 0.0
    %691 = vmatprep.subr.mxu0 0.0
    %692 = vmatpush1.msra.mxu0 0.0
    %693 = vmatprep.subr.mxu0 0.0
    %694 = vmatpush1.msra.mxu0 0.0
    %695 = vmatprep.subr.mxu0 0.0
    %696 = vmatpush1.msra.mxu0 0.0
    %697 = vmatprep.subr.mxu0 0.0
    %698 = vmatpush1.msra.mxu0 0.0
    %699 = vmatprep.subr.mxu0 0.0
    %700 = vmatpush1.msra.mxu0 0.0
    %701 = vmatprep.subr.mxu0 0.0
    %702 = vmatpush1.msra.mxu0 0.0
    %703 = vmatprep.subr.mxu0 0.0
    %704 = vmatpush1.msra.mxu0 0.0
    %705 = vmatprep.subr.mxu0 0.0
    %706 = vmatpush1.msra.mxu0 0.0
    %707 = vmatprep.subr.mxu0 0.0
    %708 = vmatpush1.msra.mxu0 0.0
    %709 = vmatprep.subr.mxu0 0.0
    %710 = vmatpush1.msra.mxu0 0.0
    %711 = vmatprep.subr.mxu0 0.0
    %712 = vmatpush1.msra.mxu0 0.0
    %713 = vmatprep.subr.mxu0 0.0
    %714 = vmatpush1.msra.mxu0 0.0
    %715 = vmatprep.subr.mxu0 0.0
    %716 = vmatpush1.msra.mxu0 0.0
    %717 = vmatprep.subr.mxu0 0.0
    %718 = vmatpush1.msra.mxu0 0.0
    %719 = vmatprep.subr.mxu0 0.0
    %720 = vmatpush1.msra.mxu0 0.0
    %721 = vmatprep.subr.mxu0 0.0
    %722 = vmatpush1.msra.mxu0 0.0
    %723 = vmatprep.subr.mxu0 0.0
    %724 = vmatpush1.msra.mxu0 0.0
    %725 = vmatprep.subr.mxu0 0.0
    %726 = vmatpush1.msra.mxu0 0.0
    %727 = vmatprep.mubr.f32.mxu0 0.0
    %728 = vmatmul.mubr.f32.gmra.mrb[0].mxu0 %v645
    %v729 = vpop.f32.mrb[0].mxu0
    %v730 = vadd.f32 0.0, %v729
    %v731 = vpop.f32.mrb[0].mxu0
    %v732 = vadd.f32 0.0, %v731
    %733 = vmatprep.mubr.f32.mxu0 0.0
    %734 = vmatmul.mubr.f32.gmra.mrb[0].mxu0 %v648
    %v735 = vpop.f32.mrb[0].mxu0
    %v736 = vadd.f32 0.0, %v735
    %v737 = vpop.f32.mrb[0].mxu0
    %v738 = vadd.f32 0.0, %v737
    %739 = vmatprep.mubr.f32.mxu0 0.0
    %740 = vmatmul.mubr.f32.gmra.mrb[0].mxu0 %v651
    %v741 = vpop.f32.mrb[0].mxu0
    %v742 = vadd.f32 0.0, %v741
    %v743 = vpop.f32.mrb[0].mxu0
    %v744 = vadd.f32 0.0, %v743
    %745 = vmatprep.mubr.f32.mxu0 0.0
    %746 = vmatmul.mubr.f32.gmra.mrb[0].mxu0 %v654
    %v747 = vpop.f32.mrb[0].mxu0
    %v748 = vadd.f32 0.0, %v747
    %v749 = vpop.f32.mrb[0].mxu0
    %v750 = vadd.f32 0.0, %v749
    %751 = vdwg.mxu0
    %v753 = vsel %vm643, %v585, 0
    %v756 = vsel %vm643, %v586, 0
    %v759 = vsel %vm643, %v587, 0
    %v762 = vsel %vm643, %v588, 0
    %v765 = vsel %vm656, %v622, 0
    %v768 = vsel %vm656, %v623, 0
    %770 = vmatprep.subr.mxu0 %v607
    %771 = vmatpush1.msra.mxu0 %v606
    %772 = vmatprep.subr.mxu0 %v609
    %773 = vmatpush1.msra.mxu0 %v608
    %774 = vmatprep.subr.mxu0 %v611
    %775 = vmatpush1.msra.mxu0 %v610
    %776 = vmatprep.subr.mxu0 %v613
    %777 = vmatpush1.msra.mxu0 %v612
    %778 = vmatprep.subr.mxu0 %v615
    %779 = vmatpush1.msra.mxu0 %v614
    %780 = vmatprep.subr.mxu0 %v617
    %781 = vmatpush1.msra.mxu0 %v616
    %782 = vmatprep.subr.mxu0 %v619
    %783 = vmatpush1.msra.mxu0 %v618
    %784 = vmatprep.subr.mxu0 %v621
    %785 = vmatpush1.msra.mxu0 %v620
    %786 = vmatprep.subr.mxu0 %v768
    %787 = vmatpush1.msra.mxu0 %v765
    %788 = vmatprep.subr.mxu0 0.0
    %789 = vmatpush1.msra.mxu0 0.0
    %790 = vmatprep.subr.mxu0 0.0
    %791 = vmatpush1.msra.mxu0 0.0
    %792 = vmatprep.subr.mxu0 0.0
    %793 = vmatpush1.msra.mxu0 0.0
    %794 = vmatprep.subr.mxu0 0.0
    %795 = vmatpush1.msra.mxu0 0.0
    %796 = vmatprep.subr.mxu0 0.0
    %797 = vmatpush1.msra.mxu0 0.0
    %798 = vmatprep.subr.mxu0 0.0
    %799 = vmatpush1.msra.mxu0 0.0
    %800 = vmatprep.subr.mxu0 0.0
    %801 = vmatpush1.msra.mxu0 0.0
    %802 = vmatprep.subr.mxu0 0.0
    %803 = vmatpush1.msra.mxu0 0.0
    %804 = vmatprep.subr.mxu0 0.0
    %805 = vmatpush1.msra.mxu0 0.0
    %806 = vmatprep.subr.mxu0 0.0
    %807 = vmatpush1.msra.mxu0 0.0
    %808 = vmatprep.subr.mxu0 0.0
    %809 = vmatpush1.msra.mxu0 0.0
    %810 = vmatprep.subr.mxu0 0.0
    %811 = vmatpush1.msra.mxu0 0.0
    %812 = vmatprep.subr.mxu0 0.0
    %813 = vmatpush1.msra.mxu0 0.0
    %814 = vmatprep.subr.mxu0 0.0
    %815 = vmatpush1.msra.mxu0 0.0
    %816 = vmatprep.subr.mxu0 0.0
    %817 = vmatpush1.msra.mxu0 0.0
    %818 = vmatprep.subr.mxu0 0.0
    %819 = vmatpush1.msra.mxu0 0.0
    %820 = vmatprep.subr.mxu0 0.0
    %821 = vmatpush1.msra.mxu0 0.0
    %822 = vmatprep.subr.mxu0 0.0
    %823 = vmatpush1.msra.mxu0 0.0
    %824 = vmatprep.subr.mxu0 0.0
    %825 = vmatpush1.msra.mxu0 0.0
    %826 = vmatprep.subr.mxu0 0.0
    %827 = vmatpush1.msra.mxu0 0.0
    %828 = vmatprep.subr.mxu0 0.0
    %829 = vmatpush1.msra.mxu0 0.0
    %830 = vmatprep.subr.mxu0 0.0
    %831 = vmatpush1.msra.mxu0 0.0
    %832 = vmatprep.subr.mxu0 0.0
    %833 = vmatpush1.msra.mxu0 0.0
    %834 = vmatprep.mubr.f32.mxu0 0.0
    %835 = vmatmul.mubr.f32.gmra.mrb[0].mxu0 %v753
    %v836 = vpop.f32.mrb[0].mxu0
    %v837 = vadd.f32 %v730, %v836
    %v838 = vpop.f32.mrb[0].mxu0
    %v839 = vadd.f32 %v732, %v838
    %840 = vmatprep.mubr.f32.mxu0 0.0
    %841 = vmatmul.mubr.f32.gmra.mrb[0].mxu0 %v756
    %v842 = vpop.f32.mrb[0].mxu0
    %v843 = vadd.f32 %v736, %v842
    %v844 = vpop.f32.mrb[0].mxu0
    %v845 = vadd.f32 %v738, %v844
    %846 = vmatprep.mubr.f32.mxu0 0.0
    %847 = vmatmul.mubr.f32.gmra.mrb[0].mxu0 %v759
    %v848 = vpop.f32.mrb[0].mxu0
    %v849 = vadd.f32 %v742, %v848
    %v850 = vpop.f32.mrb[0].mxu0
    %v851 = vadd.f32 %v744, %v850
    %852 = vmatprep.mubr.f32.mxu0 0.0
    %853 = vmatmul.mubr.f32.gmra.mrb[0].mxu0 %v762
    %v854 = vpop.f32.mrb[0].mxu0
    %v855 = vadd.f32 %v748, %v854
    %v856 = vpop.f32.mrb[0].mxu0
    %v857 = vadd.f32 %v750, %v856
    %858 = vdwg.mxu0
    %s859 = scalar_lea.vmem %s5, 288
    %v860 = vld [vmem:[%s859] sm:$0xff]
    %v861 = vld [vmem:[%s859 + $0x8] sm:$0xff]
    %v862 = vld [vmem:[%s859 + $0x10] sm:$0xff]
    %v863 = vld [vmem:[%s859 + $0x18] sm:$0xff]
    %v864 = vld [vmem:[%s859 + $0x20] sm:$0xff]
    %v865 = vld [vmem:[%s859 + $0x28] sm:$0xff]
    %v866 = vld [vmem:[%s859 + $0x30] sm:$0xff]
    %v867 = vld [vmem:[%s859 + $0x38] sm:$0xff]
    %v868 = vld [vmem:[%s859 + $0x40] sm:$0xff]
    %v869 = vld [vmem:[%s859 + $0x48] sm:$0xff]
    %v870 = vld [vmem:[%s859 + $0x50] sm:$0xff]
    %v871 = vld [vmem:[%s859 + $0x58] sm:$0xff]
    %v872 = vld [vmem:[%s859 + $0x60] sm:$0xff]
    %v873 = vld [vmem:[%s859 + $0x68] sm:$0xff]
    %v874 = vld [vmem:[%s859 + $0x70] sm:$0xff]
    %v875 = vld [vmem:[%s859 + $0x78] sm:$0xff]
    %v876 = vld [vmem:[%s859 + $0x80] sm:$0xf]
    %v877 = vld [vmem:[%s859 + $0x88] sm:$0xf]
    %v879 = vsel %vm643, %v602, 0
    %v882 = vsel %vm643, %v603, 0
    %v885 = vsel %vm643, %v604, 0
    %v888 = vsel %vm643, %v605, 0
    %v891 = vsel %vm656, %v876, 0
    %v894 = vsel %vm656, %v877, 0
    %896 = vmatprep.subr.mxu0 %v861
    %897 = vmatpush1.msra.mxu0 %v860
    %898 = vmatprep.subr.mxu0 %v863
    %899 = vmatpush1.msra.mxu0 %v862
    %900 = vmatprep.subr.mxu0 %v865
    %901 = vmatpush1.msra.mxu0 %v864
    %902 = vmatprep.subr.mxu0 %v867
    %903 = vmatpush1.msra.mxu0 %v866
    %904 = vmatprep.subr.mxu0 %v869
    %905 = vmatpush1.msra.mxu0 %v868
    %906 = vmatprep.subr.mxu0 %v871
    %907 = vmatpush1.msra.mxu0 %v870
    %908 = vmatprep.subr.mxu0 %v873
    %909 = vmatpush1.msra.mxu0 %v872
    %910 = vmatprep.subr.mxu0 %v875
    %911 = vmatpush1.msra.mxu0 %v874
    %912 = vmatprep.subr.mxu0 %v894
    %913 = vmatpush1.msra.mxu0 %v891
    %914 = vmatprep.subr.mxu0 0.0
    %915 = vmatpush1.msra.mxu0 0.0
    %916 = vmatprep.subr.mxu0 0.0
    %917 = vmatpush1.msra.mxu0 0.0
    %918 = vmatprep.subr.mxu0 0.0
    %919 = vmatpush1.msra.mxu0 0.0
    %920 = vmatprep.subr.mxu0 0.0
    %921 = vmatpush1.msra.mxu0 0.0
    %922 = vmatprep.subr.mxu0 0.0
    %923 = vmatpush1.msra.mxu0 0.0
    %924 = vmatprep.subr.mxu0 0.0
    %925 = vmatpush1.msra.mxu0 0.0
    %926 = vmatprep.subr.mxu0 0.0
    %927 = vmatpush1.msra.mxu0 0.0
    %928 = vmatprep.subr.mxu0 0.0
    %929 = vmatpush1.msra.mxu0 0.0
    %930 = vmatprep.subr.mxu0 0.0
    %931 = vmatpush1.msra.mxu0 0.0
    %932 = vmatprep.subr.mxu0 0.0
    %933 = vmatpush1.msra.mxu0 0.0
    %934 = vmatprep.subr.mxu0 0.0
    %935 = vmatpush1.msra.mxu0 0.0
    %936 = vmatprep.subr.mxu0 0.0
    %937 = vmatpush1.msra.mxu0 0.0
    %938 = vmatprep.subr.mxu0 0.0
    %939 = vmatpush1.msra.mxu0 0.0
    %940 = vmatprep.subr.mxu0 0.0
    %941 = vmatpush1.msra.mxu0 0.0
    %942 = vmatprep.subr.mxu0 0.0
    %943 = vmatpush1.msra.mxu0 0.0
    %944 = vmatprep.subr.mxu0 0.0
    %945 = vmatpush1.msra.mxu0 0.0
    %946 = vmatprep.subr.mxu0 0.0
    %947 = vmatpush1.msra.mxu0 0.0
    %948 = vmatprep.subr.mxu0 0.0
    %949 = vmatpush1.msra.mxu0 0.0
    %950 = vmatprep.subr.mxu0 0.0
    %951 = vmatpush1.msra.mxu0 0.0
    %952 = vmatprep.subr.mxu0 0.0
    %953 = vmatpush1.msra.mxu0 0.0
    %954 = vmatprep.subr.mxu0 0.0
    %955 = vmatpush1.msra.mxu0 0.0
    %956 = vmatprep.subr.mxu0 0.0
    %957 = vmatpush1.msra.mxu0 0.0
    %958 = vmatprep.subr.mxu0 0.0
    %959 = vmatpush1.msra.mxu0 0.0
    %960 = vmatprep.mubr.f32.mxu0 0.0
    %961 = vmatmul.mubr.f32.gmra.mrb[0].mxu0 %v879
    %v962 = vpop.f32.mrb[0].mxu0
    %v963 = vadd.f32 0.0, %v962
    %v964 = vpop.f32.mrb[0].mxu0
    %v965 = vadd.f32 0.0, %v964
    %966 = vmatprep.mubr.f32.mxu0 0.0
    %967 = vmatmul.mubr.f32.gmra.mrb[0].mxu0 %v882
    %v968 = vpop.f32.mrb[0].mxu0
    %v969 = vadd.f32 0.0, %v968
    %v970 = vpop.f32.mrb[0].mxu0
    %v971 = vadd.f32 0.0, %v970
    %972 = vmatprep.mubr.f32.mxu0 0.0
    %973 = vmatmul.mubr.f32.gmra.mrb[0].mxu0 %v885
    %v974 = vpop.f32.mrb[0].mxu0
    %v975 = vadd.f32 0.0, %v974
    %v976 = vpop.f32.mrb[0].mxu0
    %v977 = vadd.f32 0.0, %v976
    %978 = vmatprep.mubr.f32.mxu0 0.0
    %979 = vmatmul.mubr.f32.gmra.mrb[0].mxu0 %v888
    %v980 = vpop.f32.mrb[0].mxu0
    %v981 = vadd.f32 0.0, %v980
    %v982 = vpop.f32.mrb[0].mxu0
    %v983 = vadd.f32 0.0, %v982
    %984 = vdwg.mxu0
    %v985 = vadd.f32 %v837, %v963
    %v986 = vadd.f32 %v839, %v965
    %v987 = vadd.f32 %v843, %v969
    %v988 = vadd.f32 %v845, %v971
    %v989 = vadd.f32 %v849, %v975
    %v990 = vadd.f32 %v851, %v977
    %v991 = vadd.f32 %v855, %v981
    %v992 = vadd.f32 %v857, %v983
    %v993 = vld [vmem:[%s6] sm:$0x3]
    %v995 = vlaneseq
    %v996 = vshrl.u32 %v995, 7
    %v997 = vsub.s32 0, %v996
    %v998 = vrot.slane %v993, %v997
    %v999 = vlaneseq
    %v1000 = vshrl.u32 %v999, 7
    %v1001 = vsub.s32 1, %v1000
    %v1002 = vrot.slane %v993, %v1001
    %v1005 = vadd.f32 %v985, %v998
    %v1006 = vadd.f32 %v986, %v1002
    %v1007 = vadd.f32 %v987, %v998
    %v1008 = vadd.f32 %v988, %v1002
    %v1009 = vadd.f32 %v989, %v998
    %v1010 = vadd.f32 %v990, %v1002
    %v1011 = vadd.f32 %v991, %v998
    %v1012 = vadd.f32 %v992, %v1002
    %v1013 = vmax.f32 %v1005, 0.0
    %v1014 = vmax.f32 %v1006, 0.0
    %v1015 = vmax.f32 %v1007, 0.0
    %v1016 = vmax.f32 %v1008, 0.0
    %v1017 = vmax.f32 %v1009, 0.0
    %v1018 = vmax.f32 %v1010, 0.0
    %v1019 = vmax.f32 %v1011, 0.0
    %v1020 = vmax.f32 %v1012, 0.0
    %1021 = vst [vmem:[%s7] sm:$0xff] %v1013
    %1022 = vst [vmem:[%s7 + $0x8] sm:$0xff] %v1014
    %1023 = vst [vmem:[%s7 + $0x10] sm:$0xff] %v1015
    %1024 = vst [vmem:[%s7 + $0x18] sm:$0xff] %v1016
    %1025 = vst [vmem:[%s7 + $0x20] sm:$0xff] %v1017
    %1026 = vst [vmem:[%s7 + $0x28] sm:$0xff] %v1018
    %1027 = vst [vmem:[%s7 + $0x30] sm:$0xff] %v1019
    %1028 = vst [vmem:[%s7 + $0x38] sm:$0xff] %v1020
    %s1029 = scalar_lea.vmem %s0, 16
    %v1030 = vld [vmem:[%s1029] sm:$0xff]
    %v1031 = vld [vmem:[%s1029 + $0x8] sm:$0xff]
    %v1032 = vld [vmem:[#allocation2] sm:$0xff]
    %v1033 = vld [vmem:[#allocation2 + $0x8] sm:$0xff]
    %v1034 = vld [vmem:[#allocation2 + $0x10] sm:$0xff]
    %v1035 = vld [vmem:[#allocation2 + $0x18] sm:$0xff]
    %v1036 = vld [vmem:[#allocation2 + $0x20] sm:$0xff]
    %v1037 = vld [vmem:[#allocation2 + $0x28] sm:$0xff]
    %v1038 = vld [vmem:[#allocation2 + $0x30] sm:$0xff]
    %v1039 = vld [vmem:[#allocation2 + $0x38] sm:$0xff]
    %v1040 = vld [vmem:[#allocation2 + $0x40] sm:$0xff]
    %v1041 = vld [vmem:[#allocation2 + $0x48] sm:$0xff]
    %v1042 = vld [vmem:[#allocation2 + $0x50] sm:$0xff]
    %v1043 = vld [vmem:[#allocation2 + $0x58] sm:$0xff]
    %v1044 = vld [vmem:[#allocation2 + $0x60] sm:$0xff]
    %v1045 = vld [vmem:[#allocation2 + $0x68] sm:$0xff]
    %v1046 = vld [vmem:[#allocation2 + $0x70] sm:$0xff]
    %v1047 = vld [vmem:[#allocation2 + $0x78] sm:$0xff]
    %v1049 = vsel %vm85, %v1030, 0
    %v1052 = vsel %vm85, %v1031, 0
    %1054 = vmatprep.subr.mxu0 %v1033
    %1055 = vmatpush1.msra.mxu0 %v1032
    %1056 = vmatprep.subr.mxu0 %v1035
    %1057 = vmatpush1.msra.mxu0 %v1034
    %1058 = vmatprep.subr.mxu0 %v1037
    %1059 = vmatpush1.msra.mxu0 %v1036
    %1060 = vmatprep.subr.mxu0 %v1039
    %1061 = vmatpush1.msra.mxu0 %v1038
    %1062 = vmatprep.subr.mxu0 %v1041
    %1063 = vmatpush1.msra.mxu0 %v1040
    %1064 = vmatprep.subr.mxu0 %v1043
    %1065 = vmatpush1.msra.mxu0 %v1042
    %1066 = vmatprep.subr.mxu0 %v1045
    %1067 = vmatpush1.msra.mxu0 %v1044
    %1068 = vmatprep.subr.mxu0 %v1047
    %1069 = vmatpush1.msra.mxu0 %v1046
    %1070 = vmatprep.subr.mxu0 0.0
    %1071 = vmatpush1.msra.mxu0 0.0
    %1072 = vmatprep.subr.mxu0 0.0
    %1073 = vmatpush1.msra.mxu0 0.0
    %1074 = vmatprep.subr.mxu0 0.0
    %1075 = vmatpush1.msra.mxu0 0.0
    %1076 = vmatprep.subr.mxu0 0.0
    %1077 = vmatpush1.msra.mxu0 0.0
    %1078 = vmatprep.subr.mxu0 0.0
    %1079 = vmatpush1.msra.mxu0 0.0
    %1080 = vmatprep.subr.mxu0 0.0
    %1081 = vmatpush1.msra.mxu0 0.0
    %1082 = vmatprep.subr.mxu0 0.0
    %1083 = vmatpush1.msra.mxu0 0.0
    %1084 = vmatprep.subr.mxu0 0.0
    %1085 = vmatpush1.msra.mxu0 0.0
    %1086 = vmatprep.subr.mxu0 0.0
    %1087 = vmatpush1.msra.mxu0 0.0
    %1088 = vmatprep.subr.mxu0 0.0
    %1089 = vmatpush1.msra.mxu0 0.0
    %1090 = vmatprep.subr.mxu0 0.0
    %1091 = vmatpush1.msra.mxu0 0.0
    %1092 = vmatprep.subr.mxu0 0.0
    %1093 = vmatpush1.msra.mxu0 0.0
    %1094 = vmatprep.subr.mxu0 0.0
    %1095 = vmatpush1.msra.mxu0 0.0
    %1096 = vmatprep.subr.mxu0 0.0
    %1097 = vmatpush1.msra.mxu0 0.0
    %1098 = vmatprep.subr.mxu0 0.0
    %1099 = vmatpush1.msra.mxu0 0.0
    %1100 = vmatprep.subr.mxu0 0.0
    %1101 = vmatpush1.msra.mxu0 0.0
    %1102 = vmatprep.subr.mxu0 0.0
    %1103 = vmatpush1.msra.mxu0 0.0
    %1104 = vmatprep.subr.mxu0 0.0
    %1105 = vmatpush1.msra.mxu0 0.0
    %1106 = vmatprep.subr.mxu0 0.0
    %1107 = vmatpush1.msra.mxu0 0.0
    %1108 = vmatprep.subr.mxu0 0.0
    %1109 = vmatpush1.msra.mxu0 0.0
    %1110 = vmatprep.subr.mxu0 0.0
    %1111 = vmatpush1.msra.mxu0 0.0
    %1112 = vmatprep.subr.mxu0 0.0
    %1113 = vmatpush1.msra.mxu0 0.0
    %1114 = vmatprep.subr.mxu0 0.0
    %1115 = vmatpush1.msra.mxu0 0.0
    %1116 = vmatprep.subr.mxu0 0.0
    %1117 = vmatpush1.msra.mxu0 0.0
    %1118 = vmatprep.mubr.f32.mxu0 0.0
    %1119 = vmatmul.mubr.f32.gmra.mrb[0].mxu0 %v1049
    %v1120 = vpop.f32.mrb[0].mxu0
    %v1121 = vadd.f32 0.0, %v1120
    %v1122 = vpop.f32.mrb[0].mxu0
    %v1123 = vadd.f32 0.0, %v1122
    %1124 = vmatprep.mubr.f32.mxu0 0.0
    %1125 = vmatmul.mubr.f32.gmra.mrb[0].mxu0 %v1052
    %v1126 = vpop.f32.mrb[0].mxu0
    %v1127 = vadd.f32 0.0, %v1126
    %v1128 = vpop.f32.mrb[0].mxu0
    %v1129 = vadd.f32 0.0, %v1128
    %1130 = vdwg.mxu0
    %v1131 = vld [vmem:[#allocation6] sm:$0xff]
    %v1132 = vld [vmem:[#allocation6 + $0x8] sm:$0xff]
    %v1133 = vld [vmem:[#allocation6 + $0x10] sm:$0xff]
    %v1134 = vld [vmem:[#allocation6 + $0x18] sm:$0xff]
    %v1135 = vld [vmem:[#allocation6 + $0x20] sm:$0xff]
    %v1136 = vld [vmem:[#allocation6 + $0x28] sm:$0xff]
    %v1137 = vld [vmem:[#allocation6 + $0x30] sm:$0xff]
    %v1138 = vld [vmem:[#allocation6 + $0x38] sm:$0xff]
    %v1139 = vld [vmem:[#allocation6 + $0x40] sm:$0xff]
    %v1140 = vld [vmem:[#allocation6 + $0x48] sm:$0xff]
    %v1141 = vld [vmem:[#allocation6 + $0x50] sm:$0xff]
    %v1142 = vld [vmem:[#allocation6 + $0x58] sm:$0xff]
    %v1143 = vld [vmem:[#allocation6 + $0x60] sm:$0xff]
    %v1144 = vld [vmem:[#allocation6 + $0x68] sm:$0xff]
    %v1145 = vld [vmem:[#allocation6 + $0x70] sm:$0xff]
    %v1146 = vld [vmem:[#allocation6 + $0x78] sm:$0xff]
    %v1147 = vld [vmem:[#allocation6 + $0x80] sm:$0xff]
    %v1149 = vsel %vm186, %v1123, 0
    %v1152 = vsel %vm186, %v1129, 0
    %1154 = vmatprep.subr.mxu0 0.0
    %1155 = vmatpush1.msra.mxu0 %v1131
    %1156 = vmatprep.subr.mxu0 0.0
    %1157 = vmatpush1.msra.mxu0 %v1132
    %1158 = vmatprep.subr.mxu0 0.0
    %1159 = vmatpush1.msra.mxu0 %v1133
    %1160 = vmatprep.subr.mxu0 0.0
    %1161 = vmatpush1.msra.mxu0 %v1134
    %1162 = vmatprep.subr.mxu0 0.0
    %1163 = vmatpush1.msra.mxu0 %v1135
    %1164 = vmatprep.subr.mxu0 0.0
    %1165 = vmatpush1.msra.mxu0 %v1136
    %1166 = vmatprep.subr.mxu0 0.0
    %1167 = vmatpush1.msra.mxu0 %v1137
    %1168 = vmatprep.subr.mxu0 0.0
    %1169 = vmatpush1.msra.mxu0 %v1138
    %1170 = vmatprep.subr.mxu0 0.0
    %1171 = vmatpush1.msra.mxu0 %v1139
    %1172 = vmatprep.subr.mxu0 0.0
    %1173 = vmatpush1.msra.mxu0 %v1140
    %1174 = vmatprep.subr.mxu0 0.0
    %1175 = vmatpush1.msra.mxu0 %v1141
    %1176 = vmatprep.subr.mxu0 0.0
    %1177 = vmatpush1.msra.mxu0 %v1142
    %1178 = vmatprep.subr.mxu0 0.0
    %1179 = vmatpush1.msra.mxu0 %v1143
    %1180 = vmatprep.subr.mxu0 0.0
    %1181 = vmatpush1.msra.mxu0 %v1144
    %1182 = vmatprep.subr.mxu0 0.0
    %1183 = vmatpush1.msra.mxu0 %v1145
    %1184 = vmatprep.subr.mxu0 0.0
    %1185 = vmatpush1.msra.mxu0 %v1146
    %1186 = vmatprep.subr.mxu0 0.0
    %1187 = vmatpush1.msra.mxu0 %v1147
    %1188 = vmatprep.subr.mxu0 0.0
    %1189 = vmatpush1.msra.mxu0 0.0
    %1190 = vmatprep.subr.mxu0 0.0
    %1191 = vmatpush1.msra.mxu0 0.0
    %1192 = vmatprep.subr.mxu0 0.0
    %1193 = vmatpush1.msra.mxu0 0.0
    %1194 = vmatprep.subr.mxu0 0.0
    %1195 = vmatpush1.msra.mxu0 0.0
    %1196 = vmatprep.subr.mxu0 0.0
    %1197 = vmatpush1.msra.mxu0 0.0
    %1198 = vmatprep.subr.mxu0 0.0
    %1199 = vmatpush1.msra.mxu0 0.0
    %1200 = vmatprep.subr.mxu0 0.0
    %1201 = vmatpush1.msra.mxu0 0.0
    %1202 = vmatprep.subr.mxu0 0.0
    %1203 = vmatpush1.msra.mxu0 0.0
    %1204 = vmatprep.subr.mxu0 0.0
    %1205 = vmatpush1.msra.mxu0 0.0
    %1206 = vmatprep.subr.mxu0 0.0
    %1207 = vmatpush1.msra.mxu0 0.0
    %1208 = vmatprep.subr.mxu0 0.0
    %1209 = vmatpush1.msra.mxu0 0.0
    %1210 = vmatprep.subr.mxu0 0.0
    %1211 = vmatpush1.msra.mxu0 0.0
    %1212 = vmatprep.subr.mxu0 0.0
    %1213 = vmatpush1.msra.mxu0 0.0
    %1214 = vmatprep.subr.mxu0 0.0
    %1215 = vmatpush1.msra.mxu0 0.0
    %1216 = vmatprep.subr.mxu0 0.0
    %1217 = vmatpush1.msra.mxu0 0.0
    %1218 = vmatprep.mubr.f32.mxu0 %v1149
    %1219 = vmatmul.mubr.f32.gmra.mrb[0].mxu0 %v1121
    %v1220 = vpop.f32.mrb[0].mxu0
    %v1221 = vadd.f32 0.0, %v1220
    %v1222 = vpop.f32.mrb[0].mxu0
    %1223 = vmatprep.mubr.f32.mxu0 %v1152
    %1224 = vmatmul.mubr.f32.gmra.mrb[0].mxu0 %v1127
    %v1225 = vpop.f32.mrb[0].mxu0
    %v1226 = vadd.f32 0.0, %v1225
    %v1227 = vpop.f32.mrb[0].mxu0
    %1228 = vdwg.mxu0
    %v1229 = vld [vmem:[%s268] sm:$0xff]
    %v1230 = vld [vmem:[%s268 + $0x8] sm:$0xff]
    %v1231 = vld [vmem:[%s268 + $0x10] sm:$0xff]
    %v1232 = vld [vmem:[%s268 + $0x18] sm:$0xff]
    %v1233 = vld [vmem:[%s268 + $0x20] sm:$0xff]
    %v1234 = vld [vmem:[%s268 + $0x28] sm:$0xff]
    %v1235 = vld [vmem:[%s268 + $0x30] sm:$0xff]
    %v1236 = vld [vmem:[%s268 + $0x38] sm:$0xff]
    %v1237 = vld [vmem:[%s268 + $0x40] sm:$0xff]
    %v1238 = vld [vmem:[%s268 + $0x48] sm:$0xff]
    %v1239 = vld [vmem:[%s268 + $0x50] sm:$0xff]
    %v1240 = vld [vmem:[%s268 + $0x58] sm:$0xff]
    %v1241 = vld [vmem:[%s268 + $0x60] sm:$0xff]
    %v1242 = vld [vmem:[%s268 + $0x68] sm:$0xff]
    %v1243 = vld [vmem:[%s268 + $0x70] sm:$0xff]
    %v1244 = vld [vmem:[%s268 + $0x78] sm:$0xff]
    %v1245 = vld [vmem:[%s268 + $0x80] sm:$0xff]
    %1246 = vmatprep.subr.mxu0 0.0
    %1247 = vmatpush1.msra.mxu0 %v1229
    %1248 = vmatprep.subr.mxu0 0.0
    %1249 = vmatpush1.msra.mxu0 %v1230
    %1250 = vmatprep.subr.mxu0 0.0
    %1251 = vmatpush1.msra.mxu0 %v1231
    %1252 = vmatprep.subr.mxu0 0.0
    %1253 = vmatpush1.msra.mxu0 %v1232
    %1254 = vmatprep.subr.mxu0 0.0
    %1255 = vmatpush1.msra.mxu0 %v1233
    %1256 = vmatprep.subr.mxu0 0.0
    %1257 = vmatpush1.msra.mxu0 %v1234
    %1258 = vmatprep.subr.mxu0 0.0
    %1259 = vmatpush1.msra.mxu0 %v1235
    %1260 = vmatprep.subr.mxu0 0.0
    %1261 = vmatpush1.msra.mxu0 %v1236
    %1262 = vmatprep.subr.mxu0 0.0
    %1263 = vmatpush1.msra.mxu0 %v1237
    %1264 = vmatprep.subr.mxu0 0.0
    %1265 = vmatpush1.msra.mxu0 %v1238
    %1266 = vmatprep.subr.mxu0 0.0
    %1267 = vmatpush1.msra.mxu0 %v1239
    %1268 = vmatprep.subr.mxu0 0.0
    %1269 = vmatpush1.msra.mxu0 %v1240
    %1270 = vmatprep.subr.mxu0 0.0
    %1271 = vmatpush1.msra.mxu0 %v1241
    %1272 = vmatprep.subr.mxu0 0.0
    %1273 = vmatpush1.msra.mxu0 %v1242
    %1274 = vmatprep.subr.mxu0 0.0
    %1275 = vmatpush1.msra.mxu0 %v1243
    %1276 = vmatprep.subr.mxu0 0.0
    %1277 = vmatpush1.msra.mxu0 %v1244
    %1278 = vmatprep.subr.mxu0 0.0
    %1279 = vmatpush1.msra.mxu0 %v1245
    %1280 = vmatprep.subr.mxu0 0.0
    %1281 = vmatpush1.msra.mxu0 0.0
    %1282 = vmatprep.subr.mxu0 0.0
    %1283 = vmatpush1.msra.mxu0 0.0
    %1284 = vmatprep.subr.mxu0 0.0
    %1285 = vmatpush1.msra.mxu0 0.0
    %1286 = vmatprep.subr.mxu0 0.0
    %1287 = vmatpush1.msra.mxu0 0.0
    %1288 = vmatprep.subr.mxu0 0.0
    %1289 = vmatpush1.msra.mxu0 0.0
    %1290 = vmatprep.subr.mxu0 0.0
    %1291 = vmatpush1.msra.mxu0 0.0
    %1292 = vmatprep.subr.mxu0 0.0
    %1293 = vmatpush1.msra.mxu0 0.0
    %1294 = vmatprep.subr.mxu0 0.0
    %1295 = vmatpush1.msra.mxu0 0.0
    %1296 = vmatprep.subr.mxu0 0.0
    %1297 = vmatpush1.msra.mxu0 0.0
    %1298 = vmatprep.subr.mxu0 0.0
    %1299 = vmatpush1.msra.mxu0 0.0
    %1300 = vmatprep.subr.mxu0 0.0
    %1301 = vmatpush1.msra.mxu0 0.0
    %1302 = vmatprep.subr.mxu0 0.0
    %1303 = vmatpush1.msra.mxu0 0.0
    %1304 = vmatprep.subr.mxu0 0.0
    %1305 = vmatpush1.msra.mxu0 0.0
    %1306 = vmatprep.subr.mxu0 0.0
    %1307 = vmatpush1.msra.mxu0 0.0
    %1308 = vmatprep.subr.mxu0 0.0
    %1309 = vmatpush1.msra.mxu0 0.0
    %1310 = vmatprep.mubr.f32.mxu0 %v1149
    %1311 = vmatmul.mubr.f32.gmra.mrb[0].mxu0 %v1121
    %v1312 = vpop.f32.mrb[0].mxu0
    %v1313 = vadd.f32 0.0, %v1312
    %v1314 = vpop.f32.mrb[0].mxu0
    %1315 = vmatprep.mubr.f32.mxu0 %v1152
    %1316 = vmatmul.mubr.f32.gmra.mrb[0].mxu0 %v1127
    %v1317 = vpop.f32.mrb[0].mxu0
    %v1318 = vadd.f32 0.0, %v1317
    %v1319 = vpop.f32.mrb[0].mxu0
    %1320 = vdwg.mxu0
    %v1321 = vld [vmem:[%s361] sm:$0xff]
    %v1322 = vld [vmem:[%s361 + $0x8] sm:$0xff]
    %v1323 = vld [vmem:[%s361 + $0x10] sm:$0xff]
    %v1324 = vld [vmem:[%s361 + $0x18] sm:$0xff]
    %v1325 = vld [vmem:[%s361 + $0x20] sm:$0xff]
    %v1326 = vld [vmem:[%s361 + $0x28] sm:$0xff]
    %v1327 = vld [vmem:[%s361 + $0x30] sm:$0xff]
    %v1328 = vld [vmem:[%s361 + $0x38] sm:$0xff]
    %v1329 = vld [vmem:[%s361 + $0x40] sm:$0xff]
    %v1330 = vld [vmem:[%s361 + $0x48] sm:$0xff]
    %v1331 = vld [vmem:[%s361 + $0x50] sm:$0xff]
    %v1332 = vld [vmem:[%s361 + $0x58] sm:$0xff]
    %v1333 = vld [vmem:[%s361 + $0x60] sm:$0xff]
    %v1334 = vld [vmem:[%s361 + $0x68] sm:$0xff]
    %v1335 = vld [vmem:[%s361 + $0x70] sm:$0xff]
    %v1336 = vld [vmem:[%s361 + $0x78] sm:$0xff]
    %v1337 = vld [vmem:[%s361 + $0x80] sm:$0xff]
    %1338 = vmatprep.subr.mxu0 0.0
    %1339 = vmatpush1.msra.mxu0 %v1321
    %1340 = vmatprep.subr.mxu0 0.0
    %1341 = vmatpush1.msra.mxu0 %v1322
    %1342 = vmatprep.subr.mxu0 0.0
    %1343 = vmatpush1.msra.mxu0 %v1323
    %1344 = vmatprep.subr.mxu0 0.0
    %1345 = vmatpush1.msra.mxu0 %v1324
    %1346 = vmatprep.subr.mxu0 0.0
    %1347 = vmatpush1.msra.mxu0 %v1325
    %1348 = vmatprep.subr.mxu0 0.0
    %1349 = vmatpush1.msra.mxu0 %v1326
    %1350 = vmatprep.subr.mxu0 0.0
    %1351 = vmatpush1.msra.mxu0 %v1327
    %1352 = vmatprep.subr.mxu0 0.0
    %1353 = vmatpush1.msra.mxu0 %v1328
    %1354 = vmatprep.subr.mxu0 0.0
    %1355 = vmatpush1.msra.mxu0 %v1329
    %1356 = vmatprep.subr.mxu0 0.0
    %1357 = vmatpush1.msra.mxu0 %v1330
    %1358 = vmatprep.subr.mxu0 0.0
    %1359 = vmatpush1.msra.mxu0 %v1331
    %1360 = vmatprep.subr.mxu0 0.0
    %1361 = vmatpush1.msra.mxu0 %v1332
    %1362 = vmatprep.subr.mxu0 0.0
    %1363 = vmatpush1.msra.mxu0 %v1333
    %1364 = vmatprep.subr.mxu0 0.0
    %1365 = vmatpush1.msra.mxu0 %v1334
    %1366 = vmatprep.subr.mxu0 0.0
    %1367 = vmatpush1.msra.mxu0 %v1335
    %1368 = vmatprep.subr.mxu0 0.0
    %1369 = vmatpush1.msra.mxu0 %v1336
    %1370 = vmatprep.subr.mxu0 0.0
    %1371 = vmatpush1.msra.mxu0 %v1337
    %1372 = vmatprep.subr.mxu0 0.0
    %1373 = vmatpush1.msra.mxu0 0.0
    %1374 = vmatprep.subr.mxu0 0.0
    %1375 = vmatpush1.msra.mxu0 0.0
    %1376 = vmatprep.subr.mxu0 0.0
    %1377 = vmatpush1.msra.mxu0 0.0
    %1378 = vmatprep.subr.mxu0 0.0
    %1379 = vmatpush1.msra.mxu0 0.0
    %1380 = vmatprep.subr.mxu0 0.0
    %1381 = vmatpush1.msra.mxu0 0.0
    %1382 = vmatprep.subr.mxu0 0.0
    %1383 = vmatpush1.msra.mxu0 0.0
    %1384 = vmatprep.subr.mxu0 0.0
    %1385 = vmatpush1.msra.mxu0 0.0
    %1386 = vmatprep.subr.mxu0 0.0
    %1387 = vmatpush1.msra.mxu0 0.0
    %1388 = vmatprep.subr.mxu0 0.0
    %1389 = vmatpush1.msra.mxu0 0.0
    %1390 = vmatprep.subr.mxu0 0.0
    %1391 = vmatpush1.msra.mxu0 0.0
    %1392 = vmatprep.subr.mxu0 0.0
    %1393 = vmatpush1.msra.mxu0 0.0
    %1394 = vmatprep.subr.mxu0 0.0
    %1395 = vmatpush1.msra.mxu0 0.0
    %1396 = vmatprep.subr.mxu0 0.0
    %1397 = vmatpush1.msra.mxu0 0.0
    %1398 = vmatprep.subr.mxu0 0.0
    %1399 = vmatpush1.msra.mxu0 0.0
    %1400 = vmatprep.subr.mxu0 0.0
    %1401 = vmatpush1.msra.mxu0 0.0
    %1402 = vmatprep.mubr.f32.mxu0 %v1149
    %1403 = vmatmul.mubr.f32.gmra.mrb[0].mxu0 %v1121
    %v1404 = vpop.f32.mrb[0].mxu0
    %v1405 = vadd.f32 0.0, %v1404
    %v1406 = vpop.f32.mrb[0].mxu0
    %1407 = vmatprep.mubr.f32.mxu0 %v1152
    %1408 = vmatmul.mubr.f32.gmra.mrb[0].mxu0 %v1127
    %v1409 = vpop.f32.mrb[0].mxu0
    %v1410 = vadd.f32 0.0, %v1409
    %v1411 = vpop.f32.mrb[0].mxu0
    %1412 = vdwg.mxu0
    %v1413 = vld [vmem:[#allocation4] sm:$0xff]
    %v1414 = vld [vmem:[#allocation4 + $0x8] sm:$0xff]
    %v1415 = vld [vmem:[#allocation4 + $0x10] sm:$0xff]
    %v1416 = vld [vmem:[#allocation4 + $0x18] sm:$0xff]
    %v1417 = vld [vmem:[%s4] sm:$0x1]
    %v1419 = vlaneseq
    %v1420 = vshrl.u32 %v1419, 7
    %v1421 = vsub.s32 0, %v1420
    %v1422 = vrot.slane %v1417, %v1421
    %v1425 = vsel %vm465, %v1413, 0
    %v1428 = vsel %vm465, %v1414, 0
    %v1431 = vsel %vm465, %v1415, 0
    %v1434 = vsel %vm465, %v1416, 0
    %1436 = vmatprep.subr.mxu0 0.0
    %1437 = vmatpush1.msra.mxu0 %v1221
    %1438 = vmatprep.subr.mxu0 0.0
    %1439 = vmatpush1.msra.mxu0 %v1226
    %1440 = vmatprep.subr.mxu0 0.0
    %1441 = vmatpush1.msra.mxu0 %v1313
    %1442 = vmatprep.subr.mxu0 0.0
    %1443 = vmatpush1.msra.mxu0 %v1318
    %1444 = vmatprep.subr.mxu0 0.0
    %1445 = vmatpush1.msra.mxu0 %v1405
    %1446 = vmatprep.subr.mxu0 0.0
    %1447 = vmatpush1.msra.mxu0 %v1410
    %1448 = vmatprep.subr.mxu0 0.0
    %1449 = vmatpush1.msra.mxu0 0.0
    %1450 = vmatprep.subr.mxu0 0.0
    %1451 = vmatpush1.msra.mxu0 0.0
    %1452 = vmatprep.subr.mxu0 0.0
    %1453 = vmatpush1.msra.mxu0 0.0
    %1454 = vmatprep.subr.mxu0 0.0
    %1455 = vmatpush1.msra.mxu0 0.0
    %1456 = vmatprep.subr.mxu0 0.0
    %1457 = vmatpush1.msra.mxu0 0.0
    %1458 = vmatprep.subr.mxu0 0.0
    %1459 = vmatpush1.msra.mxu0 0.0
    %1460 = vmatprep.subr.mxu0 0.0
    %1461 = vmatpush1.msra.mxu0 0.0
    %1462 = vmatprep.subr.mxu0 0.0
    %1463 = vmatpush1.msra.mxu0 0.0
    %1464 = vmatprep.subr.mxu0 0.0
    %1465 = vmatpush1.msra.mxu0 0.0
    %1466 = vmatprep.subr.mxu0 0.0
    %1467 = vmatpush1.msra.mxu0 0.0
    %1468 = vmatprep.subr.mxu0 0.0
    %1469 = vmatpush1.msra.mxu0 0.0
    %1470 = vmatprep.subr.mxu0 0.0
    %1471 = vmatpush1.msra.mxu0 0.0
    %1472 = vmatprep.subr.mxu0 0.0
    %1473 = vmatpush1.msra.mxu0 0.0
    %1474 = vmatprep.subr.mxu0 0.0
    %1475 = vmatpush1.msra.mxu0 0.0
    %1476 = vmatprep.subr.mxu0 0.0
    %1477 = vmatpush1.msra.mxu0 0.0
    %1478 = vmatprep.subr.mxu0 0.0
    %1479 = vmatpush1.msra.mxu0 0.0
    %1480 = vmatprep.subr.mxu0 0.0
    %1481 = vmatpush1.msra.mxu0 0.0
    %1482 = vmatprep.subr.mxu0 0.0
    %1483 = vmatpush1.msra.mxu0 0.0
    %1484 = vmatprep.subr.mxu0 0.0
    %1485 = vmatpush1.msra.mxu0 0.0
    %1486 = vmatprep.subr.mxu0 0.0
    %1487 = vmatpush1.msra.mxu0 0.0
    %1488 = vmatprep.subr.mxu0 0.0
    %1489 = vmatpush1.msra.mxu0 0.0
    %1490 = vmatprep.subr.mxu0 0.0
    %1491 = vmatpush1.msra.mxu0 0.0
    %1492 = vmatprep.subr.mxu0 0.0
    %1493 = vmatpush1.msra.mxu0 0.0
    %1494 = vmatprep.subr.mxu0 0.0
    %1495 = vmatpush1.msra.mxu0 0.0
    %1496 = vmatprep.subr.mxu0 0.0
    %1497 = vmatpush1.msra.mxu0 0.0
    %1498 = vmatprep.subr.mxu0 0.0
    %1499 = vmatpush1.msra.mxu0 0.0
    %1500 = vmatprep.mubr.f32.mxu0 0.0
    %1501 = vmatmul.mubr.f32.gmra.mrb[0].mxu0 %v1425
    %v1502 = vpop.f32.mrb[0].mxu0
    %v1503 = vadd.f32 %v1422, %v1502
    %v1504 = vpop.f32.mrb[0].mxu0
    %1505 = vmatprep.mubr.f32.mxu0 0.0
    %1506 = vmatmul.mubr.f32.gmra.mrb[0].mxu0 %v1428
    %v1507 = vpop.f32.mrb[0].mxu0
    %v1508 = vadd.f32 %v1422, %v1507
    %v1509 = vpop.f32.mrb[0].mxu0
    %1510 = vmatprep.mubr.f32.mxu0 0.0
    %1511 = vmatmul.mubr.f32.gmra.mrb[0].mxu0 %v1431
    %v1512 = vpop.f32.mrb[0].mxu0
    %v1513 = vadd.f32 %v1422, %v1512
    %v1514 = vpop.f32.mrb[0].mxu0
    %1515 = vmatprep.mubr.f32.mxu0 0.0
    %1516 = vmatmul.mubr.f32.gmra.mrb[0].mxu0 %v1434
    %v1517 = vpop.f32.mrb[0].mxu0
    %v1518 = vadd.f32 %v1422, %v1517
    %v1519 = vpop.f32.mrb[0].mxu0
    %1520 = vdwg.mxu0
    %v1521 = vmax.f32 %v1503, 0.0
    %v1522 = vmax.f32 %v1508, 0.0
    %v1523 = vmax.f32 %v1513, 0.0
    %v1524 = vmax.f32 %v1518, 0.0
    %v1525 = vrot.slane %v1521, 7
    %v1526 = vrot.slane %v1522, 7
    %v1527 = vrot.slane %v1523, 7
    %v1528 = vrot.slane %v1524, 7
    %v1529 = vsel %vm580, %v1527, %v1528
    %v1530 = vsel %vm580, %v1526, %v1527
    %v1531 = vsel %vm580, %v1525, %v1526
    %v1532 = vsel %vm580, %v1528, %v1525
    %v1533 = vsel %vm572, 0.0, %v1532
    %v1534 = vsel %vm573, 0.0, %v1531
    %v1535 = vsel %vm574, 0.0, %v1530
    %v1536 = vsel %vm575, 0.0, %v1529
    %v1537 = vrot.slane %v1521, 1
    %v1538 = vrot.slane %v1522, 1
    %v1539 = vrot.slane %v1523, 1
    %v1540 = vrot.slane %v1524, 1
    %v1541 = vsel %vm597, %v1539, %v1540
    %v1542 = vsel %vm597, %v1538, %v1539
    %v1543 = vsel %vm597, %v1537, %v1538
    %v1544 = vsel %vm597, %v1540, %v1537
    %v1545 = vsel %vm589, 0.0, %v1543
    %v1546 = vsel %vm590, 0.0, %v1542
    %v1547 = vsel %vm591, 0.0, %v1541
    %v1548 = vsel %vm592, 0.0, %v1544
    %v1549 = vld [vmem:[%s5] sm:$0xff]
    %v1550 = vld [vmem:[%s5 + $0x8] sm:$0xff]
    %v1551 = vld [vmem:[%s5 + $0x10] sm:$0xff]
    %v1552 = vld [vmem:[%s5 + $0x18] sm:$0xff]
    %v1553 = vld [vmem:[%s5 + $0x20] sm:$0xff]
    %v1554 = vld [vmem:[%s5 + $0x28] sm:$0xff]
    %v1555 = vld [vmem:[%s5 + $0x30] sm:$0xff]
    %v1556 = vld [vmem:[%s5 + $0x38] sm:$0xff]
    %v1557 = vld [vmem:[%s5 + $0x40] sm:$0xff]
    %v1558 = vld [vmem:[%s5 + $0x48] sm:$0xff]
    %v1559 = vld [vmem:[%s5 + $0x50] sm:$0xff]
    %v1560 = vld [vmem:[%s5 + $0x58] sm:$0xff]
    %v1561 = vld [vmem:[%s5 + $0x60] sm:$0xff]
    %v1562 = vld [vmem:[%s5 + $0x68] sm:$0xff]
    %v1563 = vld [vmem:[%s5 + $0x70] sm:$0xff]
    %v1564 = vld [vmem:[%s5 + $0x78] sm:$0xff]
    %v1565 = vld [vmem:[%s5 + $0x80] sm:$0xf]
    %v1566 = vld [vmem:[%s5 + $0x88] sm:$0xf]
    %v1567 = vld [vmem:[%s624] sm:$0xff]
    %v1568 = vld [vmem:[%s624 + $0x8] sm:$0xff]
    %v1569 = vld [vmem:[%s624 + $0x10] sm:$0xff]
    %v1570 = vld [vmem:[%s624 + $0x18] sm:$0xff]
    %v1571 = vld [vmem:[%s624 + $0x20] sm:$0xff]
    %v1572 = vld [vmem:[%s624 + $0x28] sm:$0xff]
    %v1573 = vld [vmem:[%s624 + $0x30] sm:$0xff]
    %v1574 = vld [vmem:[%s624 + $0x38] sm:$0xff]
    %v1575 = vld [vmem:[%s624 + $0x40] sm:$0xff]
    %v1576 = vld [vmem:[%s624 + $0x48] sm:$0xff]
    %v1577 = vld [vmem:[%s624 + $0x50] sm:$0xff]
    %v1578 = vld [vmem:[%s624 + $0x58] sm:$0xff]
    %v1579 = vld [vmem:[%s624 + $0x60] sm:$0xff]
    %v1580 = vld [vmem:[%s624 + $0x68] sm:$0xff]
    %v1581 = vld [vmem:[%s624 + $0x70] sm:$0xff]
    %v1582 = vld [vmem:[%s624 + $0x78] sm:$0xff]
    %v1583 = vld [vmem:[%s624 + $0x80] sm:$0xf]
    %v1584 = vld [vmem:[%s624 + $0x88] sm:$0xf]
    %v1586 = vsel %vm643, %v1521, 0
    %v1589 = vsel %vm643, %v1522, 0
    %v1592 = vsel %vm643, %v1523, 0
    %v1595 = vsel %vm643, %v1524, 0
    %v1598 = vsel %vm656, %v1583, 0
    %v1601 = vsel %vm656, %v1584, 0
    %1603 = vmatprep.subr.mxu0 %v1568
    %1604 = vmatpush1.msra.mxu0 %v1567
    %1605 = vmatprep.subr.mxu0 %v1570
    %1606 = vmatpush1.msra.mxu0 %v1569
    %1607 = vmatprep.subr.mxu0 %v1572
    %1608 = vmatpush1.msra.mxu0 %v1571
    %1609 = vmatprep.subr.mxu0 %v1574
    %1610 = vmatpush1.msra.mxu0 %v1573
    %1611 = vmatprep.subr.mxu0 %v1576
    %1612 = vmatpush1.msra.mxu0 %v1575
    %1613 = vmatprep.subr.mxu0 %v1578
    %1614 = vmatpush1.msra.mxu0 %v1577
    %1615 = vmatprep.subr.mxu0 %v1580
    %1616 = vmatpush1.msra.mxu0 %v1579
    %1617 = vmatprep.subr.mxu0 %v1582
    %1618 = vmatpush1.msra.mxu0 %v1581
    %1619 = vmatprep.subr.mxu0 %v1601
    %1620 = vmatpush1.msra.mxu0 %v1598
    %1621 = vmatprep.subr.mxu0 0.0
    %1622 = vmatpush1.msra.mxu0 0.0
    %1623 = vmatprep.subr.mxu0 0.0
    %1624 = vmatpush1.msra.mxu0 0.0
    %1625 = vmatprep.subr.mxu0 0.0
    %1626 = vmatpush1.msra.mxu0 0.0
    %1627 = vmatprep.subr.mxu0 0.0
    %1628 = vmatpush1.msra.mxu0 0.0
    %1629 = vmatprep.subr.mxu0 0.0
    %1630 = vmatpush1.msra.mxu0 0.0
    %1631 = vmatprep.subr.mxu0 0.0
    %1632 = vmatpush1.msra.mxu0 0.0
    %1633 = vmatprep.subr.mxu0 0.0
    %1634 = vmatpush1.msra.mxu0 0.0
    %1635 = vmatprep.subr.mxu0 0.0
    %1636 = vmatpush1.msra.mxu0 0.0
    %1637 = vmatprep.subr.mxu0 0.0
    %1638 = vmatpush1.msra.mxu0 0.0
    %1639 = vmatprep.subr.mxu0 0.0
    %1640 = vmatpush1.msra.mxu0 0.0
    %1641 = vmatprep.subr.mxu0 0.0
    %1642 = vmatpush1.msra.mxu0 0.0
    %1643 = vmatprep.subr.mxu0 0.0
    %1644 = vmatpush1.msra.mxu0 0.0
    %1645 = vmatprep.subr.mxu0 0.0
    %1646 = vmatpush1.msra.mxu0 0.0
    %1647 = vmatprep.subr.mxu0 0.0
    %1648 = vmatpush1.msra.mxu0 0.0
    %1649 = vmatprep.subr.mxu0 0.0
    %1650 = vmatpush1.msra.mxu0 0.0
    %1651 = vmatprep.subr.mxu0 0.0
    %1652 = vmatpush1.msra.mxu0 0.0
    %1653 = vmatprep.subr.mxu0 0.0
    %1654 = vmatpush1.msra.mxu0 0.0
    %1655 = vmatprep.subr.mxu0 0.0
    %1656 = vmatpush1.msra.mxu0 0.0
    %1657 = vmatprep.subr.mxu0 0.0
    %1658 = vmatpush1.msra.mxu0 0.0
    %1659 = vmatprep.subr.mxu0 0.0
    %1660 = vmatpush1.msra.mxu0 0.0
    %1661 = vmatprep.subr.mxu0 0.0
    %1662 = vmatpush1.msra.mxu0 0.0
    %1663 = vmatprep.subr.mxu0 0.0
    %1664 = vmatpush1.msra.mxu0 0.0
    %1665 = vmatprep.subr.mxu0 0.0
    %1666 = vmatpush1.msra.mxu0 0.0
    %1667 = vmatprep.mubr.f32.mxu0 0.0
    %1668 = vmatmul.mubr.f32.gmra.mrb[0].mxu0 %v1586
    %v1669 = vpop.f32.mrb[0].mxu0
    %v1670 = vadd.f32 0.0, %v1669
    %v1671 = vpop.f32.mrb[0].mxu0
    %v1672 = vadd.f32 0.0, %v1671
    %1673 = vmatprep.mubr.f32.mxu0 0.0
    %1674 = vmatmul.mubr.f32.gmra.mrb[0].mxu0 %v1589
    %v1675 = vpop.f32.mrb[0].mxu0
    %v1676 = vadd.f32 0.0, %v1675
    %v1677 = vpop.f32.mrb[0].mxu0
    %v1678 = vadd.f32 0.0, %v1677
    %1679 = vmatprep.mubr.f32.mxu0 0.0
    %1680 = vmatmul.mubr.f32.gmra.mrb[0].mxu0 %v1592
    %v1681 = vpop.f32.mrb[0].mxu0
    %v1682 = vadd.f32 0.0, %v1681
    %v1683 = vpop.f32.mrb[0].mxu0
    %v1684 = vadd.f32 0.0, %v1683
    %1685 = vmatprep.mubr.f32.mxu0 0.0
    %1686 = vmatmul.mubr.f32.gmra.mrb[0].mxu0 %v1595
    %v1687 = vpop.f32.mrb[0].mxu0
    %v1688 = vadd.f32 0.0, %v1687
    %v1689 = vpop.f32.mrb[0].mxu0
    %v1690 = vadd.f32 0.0, %v1689
    %1691 = vdwg.mxu0
    %v1693 = vsel %vm643, %v1533, 0
    %v1696 = vsel %vm643, %v1534, 0
    %v1699 = vsel %vm643, %v1535, 0
    %v1702 = vsel %vm643, %v1536, 0
    %v1705 = vsel %vm656, %v1565, 0
    %v1708 = vsel %vm656, %v1566, 0
    %1710 = vmatprep.subr.mxu0 %v1550
    %1711 = vmatpush1.msra.mxu0 %v1549
    %1712 = vmatprep.subr.mxu0 %v1552
    %1713 = vmatpush1.msra.mxu0 %v1551
    %1714 = vmatprep.subr.mxu0 %v1554
    %1715 = vmatpush1.msra.mxu0 %v1553
    %1716 = vmatprep.subr.mxu0 %v1556
    %1717 = vmatpush1.msra.mxu0 %v1555
    %1718 = vmatprep.subr.mxu0 %v1558
    %1719 = vmatpush1.msra.mxu0 %v1557
    %1720 = vmatprep.subr.mxu0 %v1560
    %1721 = vmatpush1.msra.mxu0 %v1559
    %1722 = vmatprep.subr.mxu0 %v1562
    %1723 = vmatpush1.msra.mxu0 %v1561
    %1724 = vmatprep.subr.mxu0 %v1564
    %1725 = vmatpush1.msra.mxu0 %v1563
    %1726 = vmatprep.subr.mxu0 %v1708
    %1727 = vmatpush1.msra.mxu0 %v1705
    %1728 = vmatprep.subr.mxu0 0.0
    %1729 = vmatpush1.msra.mxu0 0.0
    %1730 = vmatprep.subr.mxu0 0.0
    %1731 = vmatpush1.msra.mxu0 0.0
    %1732 = vmatprep.subr.mxu0 0.0
    %1733 = vmatpush1.msra.mxu0 0.0
    %1734 = vmatprep.subr.mxu0 0.0
    %1735 = vmatpush1.msra.mxu0 0.0
    %1736 = vmatprep.subr.mxu0 0.0
    %1737 = vmatpush1.msra.mxu0 0.0
    %1738 = vmatprep.subr.mxu0 0.0
    %1739 = vmatpush1.msra.mxu0 0.0
    %1740 = vmatprep.subr.mxu0 0.0
    %1741 = vmatpush1.msra.mxu0 0.0
    %1742 = vmatprep.subr.mxu0 0.0
    %1743 = vmatpush1.msra.mxu0 0.0
    %1744 = vmatprep.subr.mxu0 0.0
    %1745 = vmatpush1.msra.mxu0 0.0
    %1746 = vmatprep.subr.mxu0 0.0
    %1747 = vmatpush1.msra.mxu0 0.0
    %1748 = vmatprep.subr.mxu0 0.0
    %1749 = vmatpush1.msra.mxu0 0.0
    %1750 = vmatprep.subr.mxu0 0.0
    %1751 = vmatpush1.msra.mxu0 0.0
    %1752 = vmatprep.subr.mxu0 0.0
    %1753 = vmatpush1.msra.mxu0 0.0
    %1754 = vmatprep.subr.mxu0 0.0
    %1755 = vmatpush1.msra.mxu0 0.0
    %1756 = vmatprep.subr.mxu0 0.0
    %1757 = vmatpush1.msra.mxu0 0.0
    %1758 = vmatprep.subr.mxu0 0.0
    %1759 = vmatpush1.msra.mxu0 0.0
    %1760 = vmatprep.subr.mxu0 0.0
    %1761 = vmatpush1.msra.mxu0 0.0
    %1762 = vmatprep.subr.mxu0 0.0
    %1763 = vmatpush1.msra.mxu0 0.0
    %1764 = vmatprep.subr.mxu0 0.0
    %1765 = vmatpush1.msra.mxu0 0.0
    %1766 = vmatprep.subr.mxu0 0.0
    %1767 = vmatpush1.msra.mxu0 0.0
    %1768 = vmatprep.subr.mxu0 0.0
    %1769 = vmatpush1.msra.mxu0 0.0
    %1770 = vmatprep.subr.mxu0 0.0
    %1771 = vmatpush1.msra.mxu0 0.0
    %1772 = vmatprep.subr.mxu0 0.0
    %1773 = vmatpush1.msra.mxu0 0.0
    %1774 = vmatprep.mubr.f32.mxu0 0.0
    %1775 = vmatmul.mubr.f32.gmra.mrb[0].mxu0 %v1693
    %v1776 = vpop.f32.mrb[0].mxu0
    %v1777 = vadd.f32 %v1670, %v1776
    %v1778 = vpop.f32.mrb[0].mxu0
    %v1779 = vadd.f32 %v1672, %v1778
    %1780 = vmatprep.mubr.f32.mxu0 0.0
    %1781 = vmatmul.mubr.f32.gmra.mrb[0].mxu0 %v1696
    %v1782 = vpop.f32.mrb[0].mxu0
    %v1783 = vadd.f32 %v1676, %v1782
    %v1784 = vpop.f32.mrb[0].mxu0
    %v1785 = vadd.f32 %v1678, %v1784
    %1786 = vmatprep.mubr.f32.mxu0 0.0
    %1787 = vmatmul.mubr.f32.gmra.mrb[0].mxu0 %v1699
    %v1788 = vpop.f32.mrb[0].mxu0
    %v1789 = vadd.f32 %v1682, %v1788
    %v1790 = vpop.f32.mrb[0].mxu0
    %v1791 = vadd.f32 %v1684, %v1790
    %1792 = vmatprep.mubr.f32.mxu0 0.0
    %1793 = vmatmul.mubr.f32.gmra.mrb[0].mxu0 %v1702
    %v1794 = vpop.f32.mrb[0].mxu0
    %v1795 = vadd.f32 %v1688, %v1794
    %v1796 = vpop.f32.mrb[0].mxu0
    %v1797 = vadd.f32 %v1690, %v1796
    %1798 = vdwg.mxu0
    %v1799 = vld [vmem:[%s859] sm:$0xff]
    %v1800 = vld [vmem:[%s859 + $0x8] sm:$0xff]
    %v1801 = vld [vmem:[%s859 + $0x10] sm:$0xff]
    %v1802 = vld [vmem:[%s859 + $0x18] sm:$0xff]
    %v1803 = vld [vmem:[%s859 + $0x20] sm:$0xff]
    %v1804 = vld [vmem:[%s859 + $0x28] sm:$0xff]
    %v1805 = vld [vmem:[%s859 + $0x30] sm:$0xff]
    %v1806 = vld [vmem:[%s859 + $0x38] sm:$0xff]
    %v1807 = vld [vmem:[%s859 + $0x40] sm:$0xff]
    %v1808 = vld [vmem:[%s859 + $0x48] sm:$0xff]
    %v1809 = vld [vmem:[%s859 + $0x50] sm:$0xff]
    %v1810 = vld [vmem:[%s859 + $0x58] sm:$0xff]
    %v1811 = vld [vmem:[%s859 + $0x60] sm:$0xff]
    %v1812 = vld [vmem:[%s859 + $0x68] sm:$0xff]
    %v1813 = vld [vmem:[%s859 + $0x70] sm:$0xff]
    %v1814 = vld [vmem:[%s859 + $0x78] sm:$0xff]
    %v1815 = vld [vmem:[%s859 + $0x80] sm:$0xf]
    %v1816 = vld [vmem:[%s859 + $0x88] sm:$0xf]
    %v1818 = vsel %vm643, %v1545, 0
    %v1821 = vsel %vm643, %v1546, 0
    %v1824 = vsel %vm643, %v1547, 0
    %v1827 = vsel %vm643, %v1548, 0
    %v1830 = vsel %vm656, %v1815, 0
    %v1833 = vsel %vm656, %v1816, 0
    %1835 = vmatprep.subr.mxu0 %v1800
    %1836 = vmatpush1.msra.mxu0 %v1799
    %1837 = vmatprep.subr.mxu0 %v1802
    %1838 = vmatpush1.msra.mxu0 %v1801
    %1839 = vmatprep.subr.mxu0 %v1804
    %1840 = vmatpush1.msra.mxu0 %v1803
    %1841 = vmatprep.subr.mxu0 %v1806
    %1842 = vmatpush1.msra.mxu0 %v1805
    %1843 = vmatprep.subr.mxu0 %v1808
    %1844 = vmatpush1.msra.mxu0 %v1807
    %1845 = vmatprep.subr.mxu0 %v1810
    %1846 = vmatpush1.msra.mxu0 %v1809
    %1847 = vmatprep.subr.mxu0 %v1812
    %1848 = vmatpush1.msra.mxu0 %v1811
    %1849 = vmatprep.subr.mxu0 %v1814
    %1850 = vmatpush1.msra.mxu0 %v1813
    %1851 = vmatprep.subr.mxu0 %v1833
    %1852 = vmatpush1.msra.mxu0 %v1830
    %1853 = vmatprep.subr.mxu0 0.0
    %1854 = vmatpush1.msra.mxu0 0.0
    %1855 = vmatprep.subr.mxu0 0.0
    %1856 = vmatpush1.msra.mxu0 0.0
    %1857 = vmatprep.subr.mxu0 0.0
    %1858 = vmatpush1.msra.mxu0 0.0
    %1859 = vmatprep.subr.mxu0 0.0
    %1860 = vmatpush1.msra.mxu0 0.0
    %1861 = vmatprep.subr.mxu0 0.0
    %1862 = vmatpush1.msra.mxu0 0.0
    %1863 = vmatprep.subr.mxu0 0.0
    %1864 = vmatpush1.msra.mxu0 0.0
    %1865 = vmatprep.subr.mxu0 0.0
    %1866 = vmatpush1.msra.mxu0 0.0
    %1867 = vmatprep.subr.mxu0 0.0
    %1868 = vmatpush1.msra.mxu0 0.0
    %1869 = vmatprep.subr.mxu0 0.0
    %1870 = vmatpush1.msra.mxu0 0.0
    %1871 = vmatprep.subr.mxu0 0.0
    %1872 = vmatpush1.msra.mxu0 0.0
    %1873 = vmatprep.subr.mxu0 0.0
    %1874 = vmatpush1.msra.mxu0 0.0
    %1875 = vmatprep.subr.mxu0 0.0
    %1876 = vmatpush1.msra.mxu0 0.0
    %1877 = vmatprep.subr.mxu0 0.0
    %1878 = vmatpush1.msra.mxu0 0.0
    %1879 = vmatprep.subr.mxu0 0.0
    %1880 = vmatpush1.msra.mxu0 0.0
    %1881 = vmatprep.subr.mxu0 0.0
    %1882 = vmatpush1.msra.mxu0 0.0
    %1883 = vmatprep.subr.mxu0 0.0
    %1884 = vmatpush1.msra.mxu0 0.0
    %1885 = vmatprep.subr.mxu0 0.0
    %1886 = vmatpush1.msra.mxu0 0.0
    %1887 = vmatprep.subr.mxu0 0.0
    %1888 = vmatpush1.msra.mxu0 0.0
    %1889 = vmatprep.subr.mxu0 0.0
    %1890 = vmatpush1.msra.mxu0 0.0
    %1891 = vmatprep.subr.mxu0 0.0
    %1892 = vmatpush1.msra.mxu0 0.0
    %1893 = vmatprep.subr.mxu0 0.0
    %1894 = vmatpush1.msra.mxu0 0.0
    %1895 = vmatprep.subr.mxu0 0.0
    %1896 = vmatpush1.msra.mxu0 0.0
    %1897 = vmatprep.subr.mxu0 0.0
    %1898 = vmatpush1.msra.mxu0 0.0
    %1899 = vmatprep.mubr.f32.mxu0 0.0
    %1900 = vmatmul.mubr.f32.gmra.mrb[0].mxu0 %v1818
    %v1901 = vpop.f32.mrb[0].mxu0
    %v1902 = vadd.f32 0.0, %v1901
    %v1903 = vpop.f32.mrb[0].mxu0
    %v1904 = vadd.f32 0.0, %v1903
    %1905 = vmatprep.mubr.f32.mxu0 0.0
    %1906 = vmatmul.mubr.f32.gmra.mrb[0].mxu0 %v1821
    %v1907 = vpop.f32.mrb[0].mxu0
    %v1908 = vadd.f32 0.0, %v1907
    %v1909 = vpop.f32.mrb[0].mxu0
    %v1910 = vadd.f32 0.0, %v1909
    %1911 = vmatprep.mubr.f32.mxu0 0.0
    %1912 = vmatmul.mubr.f32.gmra.mrb[0].mxu0 %v1824
    %v1913 = vpop.f32.mrb[0].mxu0
    %v1914 = vadd.f32 0.0, %v1913
    %v1915 = vpop.f32.mrb[0].mxu0
    %v1916 = vadd.f32 0.0, %v1915
    %1917 = vmatprep.mubr.f32.mxu0 0.0
    %1918 = vmatmul.mubr.f32.gmra.mrb[0].mxu0 %v1827
    %v1919 = vpop.f32.mrb[0].mxu0
    %v1920 = vadd.f32 0.0, %v1919
    %v1921 = vpop.f32.mrb[0].mxu0
    %v1922 = vadd.f32 0.0, %v1921
    %1923 = vdwg.mxu0
    %v1924 = vadd.f32 %v1777, %v1902
    %v1925 = vadd.f32 %v1779, %v1904
    %v1926 = vadd.f32 %v1783, %v1908
    %v1927 = vadd.f32 %v1785, %v1910
    %v1928 = vadd.f32 %v1789, %v1914
    %v1929 = vadd.f32 %v1791, %v1916
    %v1930 = vadd.f32 %v1795, %v1920
    %v1931 = vadd.f32 %v1797, %v1922
    %v1932 = vld [vmem:[%s6] sm:$0x3]
    %v1934 = vlaneseq
    %v1935 = vshrl.u32 %v1934, 7
    %v1936 = vsub.s32 0, %v1935
    %v1937 = vrot.slane %v1932, %v1936
    %v1938 = vlaneseq
    %v1939 = vshrl.u32 %v1938, 7
    %v1940 = vsub.s32 1, %v1939
    %v1941 = vrot.slane %v1932, %v1940
    %v1944 = vadd.f32 %v1924, %v1937
    %v1945 = vadd.f32 %v1925, %v1941
    %v1946 = vadd.f32 %v1926, %v1937
    %v1947 = vadd.f32 %v1927, %v1941
    %v1948 = vadd.f32 %v1928, %v1937
    %v1949 = vadd.f32 %v1929, %v1941
    %v1950 = vadd.f32 %v1930, %v1937
    %v1951 = vadd.f32 %v1931, %v1941
    %v1952 = vmax.f32 %v1944, 0.0
    %v1953 = vmax.f32 %v1945, 0.0
    %v1954 = vmax.f32 %v1946, 0.0
    %v1955 = vmax.f32 %v1947, 0.0
    %v1956 = vmax.f32 %v1948, 0.0
    %v1957 = vmax.f32 %v1949, 0.0
    %v1958 = vmax.f32 %v1950, 0.0
    %v1959 = vmax.f32 %v1951, 0.0
    %s1960 = scalar_lea.vmem %s7, 64
    %1961 = vst [vmem:[%s1960] sm:$0xff] %v1952
    %1962 = vst [vmem:[%s1960 + $0x8] sm:$0xff] %v1953
    %1963 = vst [vmem:[%s1960 + $0x10] sm:$0xff] %v1954
    %1964 = vst [vmem:[%s1960 + $0x18] sm:$0xff] %v1955
    %1965 = vst [vmem:[%s1960 + $0x20] sm:$0xff] %v1956
    %1966 = vst [vmem:[%s1960 + $0x28] sm:$0xff] %v1957
    %1967 = vst [vmem:[%s1960 + $0x30] sm:$0xff] %v1958
    %1968 = vst [vmem:[%s1960 + $0x38] sm:$0xff] %v1959
    // Predicated region
    $region42: #{conv_up_forward.1} parent=1 // pred_check
      _
    $region43: #{conv_up_forward.1} parent=1 // pred_check_branch
      %1970 = sbr.rel (0) target = $region45
    $region44: #{conv_up_forward.1} parent=1 // pred_region
      _
    $region45: #{conv_up_forward.1} parent=1 // pred_fallthru
      _
    // Predicated region
    $region46: #{conv_up_forward.1} parent=1 // pred_check
      _
    $region47: #{conv_up_forward.1} parent=1 // pred_check_branch
      %1972 = sbr.rel (0) target = $region49
    $region48: #{conv_up_forward.1} parent=1 // pred_region
      _
    $region49: #{conv_up_forward.1} parent=1 // pred_fallthru
      _
    %1973 = vsyncpa [#allocation3], 1
    %1974 = vsyncpa [#allocation5], 1

</llo_original>
